<compile_context>
chip_gen: v6e
topology: v6e:2x2x1
jax: 0.10.0
libtpu: 0.0.40
codegen_flags: <defaults>
</compile_context>

<pallas_src>
import jax
import jax.numpy as jnp
from jax.experimental import pallas as pl
from jax.experimental.pallas import tpu as pltpu


def _round_up(x, m):
    return -(-x // m) * m


def _weight_layout(E, H, Hd, V, M, O):
    """Row-band layout of the single bf16 weight slab.

    Each weight is stored transposed (in_features rows, out_features lanes),
    starting at lane 0 of its own sublane band; band starts are multiples of 16
    (bf16 sublane tile), so in-kernel static slices are free.
    """
    entries = [
        ("wx_fb", E, 8 * H),         # [wx_f | wx_b] fused along lanes (N = 8H)
        ("wh_f", H, 4 * H),
        ("wh_bl", H, 4 * H + Hd),    # [wh_b | w_lstm] fused along lanes
        ("w_ah_f", H, V),
        ("w_ah_b", H, V),
        ("w_as", Hd, V),
        ("w_A1", Hd, M),
        ("w_A2f", H, M),
        ("w_A2b", H, M),
        ("w_B", M, O),
    ]
    layout, r, width = {}, 0, 128
    for name, rows, cols in entries:
        layout[name] = (r, rows, cols)
        r += _round_up(rows, 16)
        width = max(width, cols)
    return layout, _round_up(r, 16), _round_up(width, 128)


def _bias_layout(H, Hd, V, M, O):
    """Row-band layout of the single f32 bias/vector slab (one row per 8-row band)."""
    entries = [
        ("bg_fb", 8 * H),            # [bg_f | bg_b] fused gate biases
        ("b_hl", 4 * H + Hd),        # [0..0 | b_lstm] bias for the fused wh_b|w_lstm dot
        ("b_ah", V),
        ("b_as", V),
        ("w_v", V),
        ("b_v", 1),
        ("b_A", M),
        ("b_B", O),
    ]
    layout, width = {}, 128
    for i, (name, cols) in enumerate(entries):
        layout[name] = (8 * i, cols)
        width = max(width, cols)
    return layout, 8 * len(entries), _round_up(width, 128)


def prepare_params(params):
    """One-time (model-load) packing: bf16 weight slab + f32 bias slab."""
    f32 = jnp.float32
    E = params["wx_f"].shape[0]
    H = params["wh_f"].shape[0]
    Hd = params["w_lstm"].shape[1]
    V = params["w_as"].shape[1]
    M, O = params["w_B"].shape

    wl, wrows, wwidth = _weight_layout(E, H, Hd, V, M, O)
    bl, brows, bwidth = _bias_layout(H, Hd, V, M, O)

    w = jnp.zeros((wrows, wwidth), f32)

    def putw(slab, name, mat):
        r0, rows, cols = wl[name]
        return slab.at[r0:r0 + rows, 0:cols].set(mat.astype(f32))

    w = putw(w, "wx_fb", jnp.concatenate([params["wx_f"], params["wx_b"]], axis=1))
    w = putw(w, "wh_f", params["wh_f"])
    w = putw(w, "wh_bl", jnp.concatenate([params["wh_b"], params["w_lstm"]], axis=1))
    w = putw(w, "w_ah_f", params["w_ah_f"])
    w = putw(w, "w_ah_b", params["w_ah_b"])
    w = putw(w, "w_as", params["w_as"])
    w = putw(w, "w_A1", params["w_A1"])
    w = putw(w, "w_A2f", params["w_A2f"])
    w = putw(w, "w_A2b", params["w_A2b"])
    w = putw(w, "w_B", params["w_B"])
    w_slab = w.astype(jnp.bfloat16)          # cast once at load time, not per call

    b = jnp.zeros((brows, bwidth), f32)

    def putb(slab, name, vec):
        r0, cols = bl[name]
        return slab.at[r0:r0 + 1, 0:cols].set(vec.reshape(1, -1).astype(f32))

    b = putb(b, "bg_fb", jnp.concatenate([params["bg_f"], params["bg_b"]], axis=1))
    b = putb(b, "b_hl", jnp.concatenate(
        [jnp.zeros((1, 4 * H), f32), params["b_lstm"]], axis=1))
    b = putb(b, "b_ah", params["b_ah"])
    b = putb(b, "b_as", params["b_as"])
    b = putb(b, "w_v", params["w_v"])
    b = putb(b, "b_v", params["b_v"])
    b = putb(b, "b_A", params["b_A"])
    b = putb(b, "b_B", params["b_B"])

    return {
        "embedding": params["embedding"].astype(f32),
        "w_slab": w_slab,
        "b_slab": b,
        "dims": dict(E=E, H=H, Hd=Hd, V=V, M=M, O=O),
        "w_layout": wl,
        "b_layout": bl,
    }


def _make_kernel(S, Bt, E, H, Hd, V, M, O, wl, bl, out_w):
    f32, bf16 = jnp.float32, jnp.bfloat16
    H4 = 4 * H

    def kernel(emb_ref, w_ref, b_ref, out_ref):
        def wload(name):
            r0, rows, cols = wl[name]
            return w_ref[r0:r0 + rows, 0:cols]

        def bload(name):
            r0, cols = bl[name]
            return b_ref[r0:r0 + 1, 0:cols]

        # ---- hoisted input projections, both directions in one N=8H dot ----
        emb = emb_ref[...].reshape(S * Bt, E).astype(bf16)
        xg = jnp.dot(emb, wload("wx_fb"), preferred_element_type=f32) + bload("bg_fb")
        xg = xg.reshape(S, Bt, 2 * H4)
        xg_f = xg[:, :, 0:H4]                     # 128-aligned lane slice: free
        xg_b = xg[:, :, H4:2 * H4]

        # ---- forward recurrence (serial critical path) ----------------------
        wh_f = wload("wh_f").astype(f32)          # keep the recurrent dot in f32
        h = jnp.zeros((Bt, H), f32)
        c = jnp.zeros((Bt, H), f32)
        h_fwd = []
        for t in range(S):
            pre = xg_f[t] + jnp.dot(h, wh_f, preferred_element_type=f32)  # (Bt,4H)
            sa = jax.nn.sigmoid(pre)              # one full-vreg EUP pass (r,f,o)
            ta = jnp.tanh(pre)                    # one full-vreg EUP pass (g)
            c = sa[:, H:2 * H] * c + sa[:, 0:H] * ta[:, 2 * H:3 * H]
            h = sa[:, 3 * H:4 * H] * jnp.tanh(c)
            h_fwd.append(h)
        hidden_final = h                          # (Bt, H)

        # ---- backward direction ---------------------------------------------
        # The PyTorch module feeds the constant final forward hidden into the
        # backward gates, so the hidden-side projection is loop-invariant;
        # fuse it with fc_out_lstm (shared LHS) into one N=4H+Hd dot.
        hf_b = hidden_final.astype(bf16)
        proj = jnp.dot(hf_b, wload("wh_bl"), preferred_element_type=f32) + bload("b_hl")
        hg_b = proj[:, 0:H4]                      # (Bt, 4H)
        final_hidden = proj[:, H4:H4 + Hd]        # (Bt, Hd), b_lstm already added

        # All backward gate activations vectorized over the whole sequence.
        pre_b = xg_b + hg_b[None, :, :]           # (S, Bt, 4H)
        sa_b = jax.nn.sigmoid(pre_b)
        ta_b = jnp.tanh(pre_b)
        fb = sa_b[:, :, H:2 * H]
        rg = sa_b[:, :, 0:H] * ta_b[:, :, 2 * H:3 * H]
        ob = sa_b[:, :, 3 * H:4 * H]
        c2 = jnp.zeros((Bt, H), f32)
        h_bwd = [None] * S
        for i in range(S - 1, -1, -1):            # elementwise-only scan
            c2 = fb[i] * c2 + rg[i]
            h_bwd[i] = ob[i] * jnp.tanh(c2)

        hsf_flat = jnp.concatenate(h_fwd, axis=0)             # (S*Bt, H)
        hsb_flat = jnp.concatenate(h_bwd, axis=0)
        hs_f = hsf_flat.reshape(S, Bt, H)
        hs_b = hsb_flat.reshape(S, Bt, H)

        # ---- additive attention, fully vectorized over the sequence ---------
        wh_feat = (jnp.dot(hsf_flat.astype(bf16), wload("w_ah_f"),
                           preferred_element_type=f32)
                   + jnp.dot(hsb_flat.astype(bf16), wload("w_ah_b"),
                             preferred_element_type=f32)
                   + bload("b_ah"))                            # (S*Bt, V)
        ws_feat = (jnp.dot(final_hidden.astype(bf16), wload("w_as"),
                           preferred_element_type=f32)
                   + bload("b_as"))                            # (Bt, V)
        feat = jnp.tanh(wh_feat.reshape(S, Bt, V) + ws_feat[None, :, :])
        score = (jnp.sum(feat * bload("w_v"), axis=-1, keepdims=True)
                 + bload("b_v"))                               # (S, Bt, 1)

        # softmax over the sequence axis (torch nn.Softmax dim=1 on (B, S))
        m = jnp.max(score, axis=0, keepdims=True)
        e = jnp.exp(score - m)
        denom = jnp.sum(e, axis=0, keepdims=True)
        attn = e * pl.reciprocal(denom, approx=True)           # (S, Bt, 1)

        attn_out_f = jnp.sum(attn * hs_f, axis=0)              # (Bt, H)
        attn_out_b = jnp.sum(attn * hs_b, axis=0)

        # ---- output MLP -------------------------------------------------------
        hA = (jnp.dot(final_hidden.astype(bf16), wload("w_A1"),
                      preferred_element_type=f32)
              + jnp.dot(attn_out_f.astype(bf16), wload("w_A2f"),
                        preferred_element_type=f32)
              + jnp.dot(attn_out_b.astype(bf16), wload("w_A2b"),
                        preferred_element_type=f32)
              + bload("b_A"))                                  # (Bt, M)
        logits = (jnp.dot(hA.astype(bf16), wload("w_B"),
                          preferred_element_type=f32)
                  + bload("b_B"))                              # (Bt, O)
        sig = jax.nn.sigmoid(logits)

        # single lane-dense (Bt, 128) store: [sig | hidden | zero pad]
        pad = jnp.zeros((Bt, out_w - O - H), f32)
        out_ref[...] = jnp.concatenate([sig, hidden_final, pad], axis=-1)

    return kernel


def attention_bilstm_forward(input_words, packed):
    """Embedding lookup + layout glue in JAX, the rest in one Pallas kernel."""
    d = packed["dims"]
    E, H, Hd, V, M, O = d["E"], d["H"], d["Hd"], d["V"], d["M"], d["O"]
    B, S = input_words.shape
    OUT_W = 128
    assert O + H <= OUT_W

    emb = jnp.take(packed["embedding"], input_words, axis=0)    # (B, S, E) f32
    emb = jnp.transpose(emb, (1, 0, 2))                         # (S, B, E) time-major

    # Batch grid axis (parallel) so v7x's second TensorCore can be used when B
    # grows; grid=(1,) at the demo size.
    B_TILE = 8 if B % 8 == 0 else B
    grid = (B // B_TILE,)
    kernel = _make_kernel(S, B_TILE, E, H, Hd, V, M, O,
                          packed["w_layout"], packed["b_layout"], OUT_W)

    w_slab, b_slab = packed["w_slab"], packed["b_slab"]
    out = pl.pallas_call(
        kernel,
        out_shape=jax.ShapeDtypeStruct((B, OUT_W), jnp.float32),
        grid=grid,
        in_specs=[
            pl.BlockSpec((S, B_TILE, E), lambda i: (0, i, 0)),
            pl.BlockSpec(w_slab.shape, lambda i: (0, 0)),
            pl.BlockSpec(b_slab.shape, lambda i: (0, 0)),
        ],
        out_specs=pl.BlockSpec((B_TILE, OUT_W), lambda i: (i, 0)),
        compiler_params=pltpu.CompilerParams(
            dimension_semantics=("parallel",)),
    )(emb, w_slab, b_slab)

    sig = out[:, 0:O]
    hidden = out[:, O:O + H]
    return sig, hidden


def reference_forward(input_words, p):
    """Pure-JAX (f32) mirror of the PyTorch forward, using the raw params."""
    sigmoid = jax.nn.sigmoid
    emb = jnp.take(p["embedding"], input_words, axis=0)          # (B, S, E)
    emb = jnp.transpose(emb, (1, 0, 2))                          # (S, B, E)
    S, B, _ = emb.shape
    H = p["wh_f"].shape[0]

    def gates(pre):
        return (sigmoid(pre[:, 0:H]), sigmoid(pre[:, H:2 * H]),
                jnp.tanh(pre[:, 2 * H:3 * H]), sigmoid(pre[:, 3 * H:4 * H]))

    h = jnp.zeros((B, H), jnp.float32)
    c = jnp.zeros((B, H), jnp.float32)
    hs1 = []
    for i in range(S):
        r, f, g, o = gates(emb[i] @ p["wx_f"] + h @ p["wh_f"] + p["bg_f"])
        c = f * c + r * g
        h = o * jnp.tanh(c)
        hs1.append(h)

    c2 = jnp.zeros((B, H), jnp.float32)
    hs2 = [None] * S
    for i in range(S - 1, -1, -1):   # uses final forward `h`, as in PyTorch
        r, f, g, o = gates(emb[i] @ p["wx_b"] + h @ p["wh_b"] + p["bg_b"])
        c2 = f * c2 + r * g
        hs2[i] = o * jnp.tanh(c2)

    final_hidden = h @ p["w_lstm"] + p["b_lstm"]                 # (B, Hd)
    out1 = jnp.stack(hs1, axis=1)                                # (B, S, H)
    out2 = jnp.stack(hs2, axis=1)                                # (B, S, H)
    outputs = jnp.concatenate([out1, out2], axis=2)              # (B, S, 2H)

    WH = out1 @ p["w_ah_f"] + out2 @ p["w_ah_b"] + p["b_ah"]     # (B, S, V)
    WS = final_hidden @ p["w_as"] + p["b_as"]                    # (B, V)
    feat = jnp.tanh(WH + WS[:, None, :])
    score = jnp.einsum("bsv,v->bs", feat, p["w_v"][0]) + p["b_v"][0, 0]
    attn = jax.nn.softmax(score, axis=1)                         # (B, S)
    attn_out = jnp.einsum("bsd,bs->bd", outputs, attn)           # (B, 2H)

    cat = jnp.concatenate([final_hidden, attn_out], axis=1)
    wA = jnp.concatenate([p["w_A1"], p["w_A2f"], p["w_A2b"]], axis=0)
    hA = cat @ wA + p["b_A"]
    out = hA @ p["w_B"] + p["b_B"]
    return jax.nn.sigmoid(out), h


if __name__ == "__main__":
    # Small shapes consistent with the module: batch=8, seq=8, n_embed=32,
    # hidden_node=32, hidden_node_decode=32, v_attention_dimensionality=32,
    # n_output=2, vocab=100, fc_out_attentA width = (2*32+32)//2 = 48.
    B, S, E, H, Hd, V_ATT, O, VOC = 8, 8, 32, 32, 32, 32, 2, 100
    M = (2 * H + Hd) // 2

    key = jax.random.PRNGKey(0)
    ks = jax.random.split(key, 23)

    def rn(k, shape, scale=0.1):
        return scale * jax.random.normal(k, shape, jnp.float32)

    params = {
        "embedding": rn(ks[0], (VOC, E), 1.0),
        # forward-direction fused gates [r, f, g, o]
        "wx_f": rn(ks[1], (E, 4 * H)),
        "wh_f": rn(ks[2], (H, 4 * H)),
        "bg_f": rn(ks[3], (1, 4 * H)),
        # backward-direction fused gates
        "wx_b": rn(ks[4], (E, 4 * H)),
        "wh_b": rn(ks[5], (H, 4 * H)),
        "bg_b": rn(ks[6], (1, 4 * H)),
        # fc_out_lstm
        "w_lstm": rn(ks[7], (H, Hd)),
        "b_lstm": rn(ks[8], (1, Hd)),
        # additive attention
        "w_ah_f": rn(ks[9], (H, V_ATT)),
        "w_ah_b": rn(ks[10], (H, V_ATT)),
        "b_ah": rn(ks[11], (1, V_ATT)),
        "w_as": rn(ks[12], (Hd, V_ATT)),
        "b_as": rn(ks[13], (1, V_ATT)),
        "w_v": rn(ks[14], (1, V_ATT)),
        "b_v": rn(ks[15], (1, 1)),
        # output MLP (fc_out_attentA split over [final_hidden, attn_f, attn_b])
        "w_A1": rn(ks[16], (Hd, M)),
        "w_A2f": rn(ks[17], (H, M)),
        "w_A2b": rn(ks[18], (H, M)),
        "b_A": rn(ks[19], (1, M)),
        "w_B": rn(ks[20], (M, O)),
        "b_B": rn(ks[21], (1, O)),
    }
    input_words = jax.random.randint(ks[22], (B, S), 0, VOC, dtype=jnp.int32)

    packed = prepare_params(params)           # one-time load-time packing
    sig, hidden = attention_bilstm_forward(input_words, packed)
    jax.block_until_ready((sig, hidden))

    sig_ref, hidden_ref = reference_forward(input_words, params)
    assert sig.shape == (B, O) and hidden.shape == (B, H)
    assert jnp.allclose(sig, sig_ref, atol=1e-2, rtol=1e-2)
    assert jnp.allclose(hidden, hidden_ref, atol=1e-2, rtol=1e-2)
    print("KERNEL_OK")
</pallas_src>

<mosaic_0001>
module attributes {stable_mosaic.version = 11 : i64} {
  func.func @kernel(%arg0: i32, %arg1: memref<8x8x32xf32, #tpu.memory_space<vmem>>, %arg2: memref<336x256xbf16, #tpu.memory_space<vmem>>, %arg3: memref<64x256xf32, #tpu.memory_space<vmem>>, %arg4: memref<8x128xf32, #tpu.memory_space<vmem>>) attributes {dimension_semantics = [#tpu.dimension_semantics<parallel>], iteration_bounds = array<i64: 1>, scalar_prefetch = 0 : i64, scratch_operands = 0 : i64, tpu.core_type = #tpu.core_type<tc>, window_params = [{transform_indices = @transform_0, window_bounds = array<i64: 8, 8, 32>}, {pipeline_mode = #tpu.pipeline_mode<synchronous>, transform_indices = @transform_1, window_bounds = array<i64: 336, 256>}, {pipeline_mode = #tpu.pipeline_mode<synchronous>, transform_indices = @transform_2, window_bounds = array<i64: 64, 256>}, {transform_indices = @transform_3, window_bounds = array<i64: 8, 128>}]} {
    %c0 = arith.constant 0 : index
    %c0_0 = arith.constant 0 : index
    %c0_1 = arith.constant 0 : index
    %0 = vector.load %arg1[%c0, %c0_0, %c0_1] : memref<8x8x32xf32, #tpu.memory_space<vmem>>, vector<8x8x32xf32>
    %1 = vector.shape_cast %0 : vector<8x8x32xf32> to vector<64x32xf32>
    %2 = arith.truncf %1 : vector<64x32xf32> to vector<64x32xbf16>
    %c0_2 = arith.constant 0 : index
    %c0_3 = arith.constant 0 : index
    %3 = vector.load %arg2[%c0_2, %c0_3] : memref<336x256xbf16, #tpu.memory_space<vmem>>, vector<32x256xbf16>
    %cst = arith.constant dense<0.000000e+00> : vector<64x256xf32>
    %4 = tpu.matmul %2, %3, %cst {dimension_numbers = #tpu.dot_dimension_numbers<[1], [0], [0], [1], [0, 0, 1, 1], [], []>} : vector<64x32xbf16>, vector<32x256xbf16>, vector<64x256xf32> -> vector<64x256xf32>
    %c0_4 = arith.constant 0 : index
    %c0_5 = arith.constant 0 : index
    %5 = vector.load %arg3[%c0_4, %c0_5] : memref<64x256xf32, #tpu.memory_space<vmem>>, vector<1x256xf32>
    %6 = vector.broadcast %5 : vector<1x256xf32> to vector<64x256xf32>
    %7 = arith.addf %4, %6 : vector<64x256xf32>
    %8 = vector.shape_cast %7 : vector<64x256xf32> to vector<8x8x256xf32>
    %9 = vector.extract_strided_slice %8 {offsets = [0, 0, 0], sizes = [8, 8, 128], strides = [1, 1, 1]} : vector<8x8x256xf32> to vector<8x8x128xf32>
    %10 = vector.extract_strided_slice %8 {offsets = [0, 0, 128], sizes = [8, 8, 128], strides = [1, 1, 1]} : vector<8x8x256xf32> to vector<8x8x128xf32>
    %c32 = arith.constant 32 : index
    %c0_6 = arith.constant 0 : index
    %11 = vector.load %arg2[%c32, %c0_6] : memref<336x256xbf16, #tpu.memory_space<vmem>>, vector<32x128xbf16>
    %12 = arith.extf %11 : vector<32x128xbf16> to vector<32x128xf32>
    %cst_7 = arith.constant 0.000000e+00 : f32
    %13 = vector.broadcast %cst_7 : f32 to vector<8x32xf32>
    %cst_8 = arith.constant 0.000000e+00 : f32
    %14 = vector.broadcast %cst_8 : f32 to vector<8x32xf32>
    %15 = vector.extract_strided_slice %9 {offsets = [0, 0, 0], sizes = [1, 8, 128], strides = [1, 1, 1]} : vector<8x8x128xf32> to vector<1x8x128xf32>
    %16 = vector.shape_cast %15 : vector<1x8x128xf32> to vector<8x128xf32>
    %cst_9 = arith.constant dense<0.000000e+00> : vector<8x128xf32>
    %17 = tpu.matmul %13, %12, %cst_9 {dimension_numbers = #tpu.dot_dimension_numbers<[1], [0], [0], [1], [0, 0, 1, 1], [], []>} : vector<8x32xf32>, vector<32x128xf32>, vector<8x128xf32> -> vector<8x128xf32>
    %18 = arith.addf %16, %17 : vector<8x128xf32>
    %19 = arith.negf %18 : vector<8x128xf32>
    %20 = math.exp %19 : vector<8x128xf32>
    %cst_10 = arith.constant 1.000000e+00 : f32
    %21 = vector.broadcast %cst_10 : f32 to vector<8x128xf32>
    %22 = arith.addf %21, %20 : vector<8x128xf32>
    %23 = arith.divf %21, %22 : vector<8x128xf32>
    %24 = math.tanh %18 : vector<8x128xf32>
    %25 = vector.extract_strided_slice %23 {offsets = [0, 32], sizes = [8, 32], strides = [1, 1]} : vector<8x128xf32> to vector<8x32xf32>
    %26 = arith.mulf %25, %14 : vector<8x32xf32>
    %27 = vector.extract_strided_slice %23 {offsets = [0, 0], sizes = [8, 32], strides = [1, 1]} : vector<8x128xf32> to vector<8x32xf32>
    %28 = vector.extract_strided_slice %24 {offsets = [0, 64], sizes = [8, 32], strides = [1, 1]} : vector<8x128xf32> to vector<8x32xf32>
    %29 = arith.mulf %27, %28 : vector<8x32xf32>
    %30 = arith.addf %26, %29 : vector<8x32xf32>
    %31 = vector.extract_strided_slice %23 {offsets = [0, 96], sizes = [8, 32], strides = [1, 1]} : vector<8x128xf32> to vector<8x32xf32>
    %32 = math.tanh %30 : vector<8x32xf32>
    %33 = arith.mulf %31, %32 : vector<8x32xf32>
    %34 = vector.extract_strided_slice %9 {offsets = [1, 0, 0], sizes = [1, 8, 128], strides = [1, 1, 1]} : vector<8x8x128xf32> to vector<1x8x128xf32>
    %35 = vector.shape_cast %34 : vector<1x8x128xf32> to vector<8x128xf32>
    %cst_11 = arith.constant dense<0.000000e+00> : vector<8x128xf32>
    %36 = tpu.matmul %33, %12, %cst_11 {dimension_numbers = #tpu.dot_dimension_numbers<[1], [0], [0], [1], [0, 0, 1, 1], [], []>} : vector<8x32xf32>, vector<32x128xf32>, vector<8x128xf32> -> vector<8x128xf32>
    %37 = arith.addf %35, %36 : vector<8x128xf32>
    %38 = arith.negf %37 : vector<8x128xf32>
    %39 = math.exp %38 : vector<8x128xf32>
    %cst_12 = arith.constant 1.000000e+00 : f32
    %40 = vector.broadcast %cst_12 : f32 to vector<8x128xf32>
    %41 = arith.addf %40, %39 : vector<8x128xf32>
    %42 = arith.divf %40, %41 : vector<8x128xf32>
    %43 = math.tanh %37 : vector<8x128xf32>
    %44 = vector.extract_strided_slice %42 {offsets = [0, 32], sizes = [8, 32], strides = [1, 1]} : vector<8x128xf32> to vector<8x32xf32>
    %45 = arith.mulf %44, %30 : vector<8x32xf32>
    %46 = vector.extract_strided_slice %42 {offsets = [0, 0], sizes = [8, 32], strides = [1, 1]} : vector<8x128xf32> to vector<8x32xf32>
    %47 = vector.extract_strided_slice %43 {offsets = [0, 64], sizes = [8, 32], strides = [1, 1]} : vector<8x128xf32> to vector<8x32xf32>
    %48 = arith.mulf %46, %47 : vector<8x32xf32>
    %49 = arith.addf %45, %48 : vector<8x32xf32>
    %50 = vector.extract_strided_slice %42 {offsets = [0, 96], sizes = [8, 32], strides = [1, 1]} : vector<8x128xf32> to vector<8x32xf32>
    %51 = math.tanh %49 : vector<8x32xf32>
    %52 = arith.mulf %50, %51 : vector<8x32xf32>
    %53 = vector.extract_strided_slice %9 {offsets = [2, 0, 0], sizes = [1, 8, 128], strides = [1, 1, 1]} : vector<8x8x128xf32> to vector<1x8x128xf32>
    %54 = vector.shape_cast %53 : vector<1x8x128xf32> to vector<8x128xf32>
    %cst_13 = arith.constant dense<0.000000e+00> : vector<8x128xf32>
    %55 = tpu.matmul %52, %12, %cst_13 {dimension_numbers = #tpu.dot_dimension_numbers<[1], [0], [0], [1], [0, 0, 1, 1], [], []>} : vector<8x32xf32>, vector<32x128xf32>, vector<8x128xf32> -> vector<8x128xf32>
    %56 = arith.addf %54, %55 : vector<8x128xf32>
    %57 = arith.negf %56 : vector<8x128xf32>
    %58 = math.exp %57 : vector<8x128xf32>
    %cst_14 = arith.constant 1.000000e+00 : f32
    %59 = vector.broadcast %cst_14 : f32 to vector<8x128xf32>
    %60 = arith.addf %59, %58 : vector<8x128xf32>
    %61 = arith.divf %59, %60 : vector<8x128xf32>
    %62 = math.tanh %56 : vector<8x128xf32>
    %63 = vector.extract_strided_slice %61 {offsets = [0, 32], sizes = [8, 32], strides = [1, 1]} : vector<8x128xf32> to vector<8x32xf32>
    %64 = arith.mulf %63, %49 : vector<8x32xf32>
    %65 = vector.extract_strided_slice %61 {offsets = [0, 0], sizes = [8, 32], strides = [1, 1]} : vector<8x128xf32> to vector<8x32xf32>
    %66 = vector.extract_strided_slice %62 {offsets = [0, 64], sizes = [8, 32], strides = [1, 1]} : vector<8x128xf32> to vector<8x32xf32>
    %67 = arith.mulf %65, %66 : vector<8x32xf32>
    %68 = arith.addf %64, %67 : vector<8x32xf32>
    %69 = vector.extract_strided_slice %61 {offsets = [0, 96], sizes = [8, 32], strides = [1, 1]} : vector<8x128xf32> to vector<8x32xf32>
    %70 = math.tanh %68 : vector<8x32xf32>
    %71 = arith.mulf %69, %70 : vector<8x32xf32>
    %72 = vector.extract_strided_slice %9 {offsets = [3, 0, 0], sizes = [1, 8, 128], strides = [1, 1, 1]} : vector<8x8x128xf32> to vector<1x8x128xf32>
    %73 = vector.shape_cast %72 : vector<1x8x128xf32> to vector<8x128xf32>
    %cst_15 = arith.constant dense<0.000000e+00> : vector<8x128xf32>
    %74 = tpu.matmul %71, %12, %cst_15 {dimension_numbers = #tpu.dot_dimension_numbers<[1], [0], [0], [1], [0, 0, 1, 1], [], []>} : vector<8x32xf32>, vector<32x128xf32>, vector<8x128xf32> -> vector<8x128xf32>
    %75 = arith.addf %73, %74 : vector<8x128xf32>
    %76 = arith.negf %75 : vector<8x128xf32>
    %77 = math.exp %76 : vector<8x128xf32>
    %cst_16 = arith.constant 1.000000e+00 : f32
    %78 = vector.broadcast %cst_16 : f32 to vector<8x128xf32>
    %79 = arith.addf %78, %77 : vector<8x128xf32>
    %80 = arith.divf %78, %79 : vector<8x128xf32>
    %81 = math.tanh %75 : vector<8x128xf32>
    %82 = vector.extract_strided_slice %80 {offsets = [0, 32], sizes = [8, 32], strides = [1, 1]} : vector<8x128xf32> to vector<8x32xf32>
    %83 = arith.mulf %82, %68 : vector<8x32xf32>
    %84 = vector.extract_strided_slice %80 {offsets = [0, 0], sizes = [8, 32], strides = [1, 1]} : vector<8x128xf32> to vector<8x32xf32>
    %85 = vector.extract_strided_slice %81 {offsets = [0, 64], sizes = [8, 32], strides = [1, 1]} : vector<8x128xf32> to vector<8x32xf32>
    %86 = arith.mulf %84, %85 : vector<8x32xf32>
    %87 = arith.addf %83, %86 : vector<8x32xf32>
    %88 = vector.extract_strided_slice %80 {offsets = [0, 96], sizes = [8, 32], strides = [1, 1]} : vector<8x128xf32> to vector<8x32xf32>
    %89 = math.tanh %87 : vector<8x32xf32>
    %90 = arith.mulf %88, %89 : vector<8x32xf32>
    %91 = vector.extract_strided_slice %9 {offsets = [4, 0, 0], sizes = [1, 8, 128], strides = [1, 1, 1]} : vector<8x8x128xf32> to vector<1x8x128xf32>
    %92 = vector.shape_cast %91 : vector<1x8x128xf32> to vector<8x128xf32>
    %cst_17 = arith.constant dense<0.000000e+00> : vector<8x128xf32>
    %93 = tpu.matmul %90, %12, %cst_17 {dimension_numbers = #tpu.dot_dimension_numbers<[1], [0], [0], [1], [0, 0, 1, 1], [], []>} : vector<8x32xf32>, vector<32x128xf32>, vector<8x128xf32> -> vector<8x128xf32>
    %94 = arith.addf %92, %93 : vector<8x128xf32>
    %95 = arith.negf %94 : vector<8x128xf32>
    %96 = math.exp %95 : vector<8x128xf32>
    %cst_18 = arith.constant 1.000000e+00 : f32
    %97 = vector.broadcast %cst_18 : f32 to vector<8x128xf32>
    %98 = arith.addf %97, %96 : vector<8x128xf32>
    %99 = arith.divf %97, %98 : vector<8x128xf32>
    %100 = math.tanh %94 : vector<8x128xf32>
    %101 = vector.extract_strided_slice %99 {offsets = [0, 32], sizes = [8, 32], strides = [1, 1]} : vector<8x128xf32> to vector<8x32xf32>
    %102 = arith.mulf %101, %87 : vector<8x32xf32>
    %103 = vector.extract_strided_slice %99 {offsets = [0, 0], sizes = [8, 32], strides = [1, 1]} : vector<8x128xf32> to vector<8x32xf32>
    %104 = vector.extract_strided_slice %100 {offsets = [0, 64], sizes = [8, 32], strides = [1, 1]} : vector<8x128xf32> to vector<8x32xf32>
    %105 = arith.mulf %103, %104 : vector<8x32xf32>
    %106 = arith.addf %102, %105 : vector<8x32xf32>
    %107 = vector.extract_strided_slice %99 {offsets = [0, 96], sizes = [8, 32], strides = [1, 1]} : vector<8x128xf32> to vector<8x32xf32>
    %108 = math.tanh %106 : vector<8x32xf32>
    %109 = arith.mulf %107, %108 : vector<8x32xf32>
    %110 = vector.extract_strided_slice %9 {offsets = [5, 0, 0], sizes = [1, 8, 128], strides = [1, 1, 1]} : vector<8x8x128xf32> to vector<1x8x128xf32>
    %111 = vector.shape_cast %110 : vector<1x8x128xf32> to vector<8x128xf32>
    %cst_19 = arith.constant dense<0.000000e+00> : vector<8x128xf32>
    %112 = tpu.matmul %109, %12, %cst_19 {dimension_numbers = #tpu.dot_dimension_numbers<[1], [0], [0], [1], [0, 0, 1, 1], [], []>} : vector<8x32xf32>, vector<32x128xf32>, vector<8x128xf32> -> vector<8x128xf32>
    %113 = arith.addf %111, %112 : vector<8x128xf32>
    %114 = arith.negf %113 : vector<8x128xf32>
    %115 = math.exp %114 : vector<8x128xf32>
    %cst_20 = arith.constant 1.000000e+00 : f32
    %116 = vector.broadcast %cst_20 : f32 to vector<8x128xf32>
    %117 = arith.addf %116, %115 : vector<8x128xf32>
    %118 = arith.divf %116, %117 : vector<8x128xf32>
    %119 = math.tanh %113 : vector<8x128xf32>
    %120 = vector.extract_strided_slice %118 {offsets = [0, 32], sizes = [8, 32], strides = [1, 1]} : vector<8x128xf32> to vector<8x32xf32>
    %121 = arith.mulf %120, %106 : vector<8x32xf32>
    %122 = vector.extract_strided_slice %118 {offsets = [0, 0], sizes = [8, 32], strides = [1, 1]} : vector<8x128xf32> to vector<8x32xf32>
    %123 = vector.extract_strided_slice %119 {offsets = [0, 64], sizes = [8, 32], strides = [1, 1]} : vector<8x128xf32> to vector<8x32xf32>
    %124 = arith.mulf %122, %123 : vector<8x32xf32>
    %125 = arith.addf %121, %124 : vector<8x32xf32>
    %126 = vector.extract_strided_slice %118 {offsets = [0, 96], sizes = [8, 32], strides = [1, 1]} : vector<8x128xf32> to vector<8x32xf32>
    %127 = math.tanh %125 : vector<8x32xf32>
    %128 = arith.mulf %126, %127 : vector<8x32xf32>
    %129 = vector.extract_strided_slice %9 {offsets = [6, 0, 0], sizes = [1, 8, 128], strides = [1, 1, 1]} : vector<8x8x128xf32> to vector<1x8x128xf32>
    %130 = vector.shape_cast %129 : vector<1x8x128xf32> to vector<8x128xf32>
    %cst_21 = arith.constant dense<0.000000e+00> : vector<8x128xf32>
    %131 = tpu.matmul %128, %12, %cst_21 {dimension_numbers = #tpu.dot_dimension_numbers<[1], [0], [0], [1], [0, 0, 1, 1], [], []>} : vector<8x32xf32>, vector<32x128xf32>, vector<8x128xf32> -> vector<8x128xf32>
    %132 = arith.addf %130, %131 : vector<8x128xf32>
    %133 = arith.negf %132 : vector<8x128xf32>
    %134 = math.exp %133 : vector<8x128xf32>
    %cst_22 = arith.constant 1.000000e+00 : f32
    %135 = vector.broadcast %cst_22 : f32 to vector<8x128xf32>
    %136 = arith.addf %135, %134 : vector<8x128xf32>
    %137 = arith.divf %135, %136 : vector<8x128xf32>
    %138 = math.tanh %132 : vector<8x128xf32>
    %139 = vector.extract_strided_slice %137 {offsets = [0, 32], sizes = [8, 32], strides = [1, 1]} : vector<8x128xf32> to vector<8x32xf32>
    %140 = arith.mulf %139, %125 : vector<8x32xf32>
    %141 = vector.extract_strided_slice %137 {offsets = [0, 0], sizes = [8, 32], strides = [1, 1]} : vector<8x128xf32> to vector<8x32xf32>
    %142 = vector.extract_strided_slice %138 {offsets = [0, 64], sizes = [8, 32], strides = [1, 1]} : vector<8x128xf32> to vector<8x32xf32>
    %143 = arith.mulf %141, %142 : vector<8x32xf32>
    %144 = arith.addf %140, %143 : vector<8x32xf32>
    %145 = vector.extract_strided_slice %137 {offsets = [0, 96], sizes = [8, 32], strides = [1, 1]} : vector<8x128xf32> to vector<8x32xf32>
    %146 = math.tanh %144 : vector<8x32xf32>
    %147 = arith.mulf %145, %146 : vector<8x32xf32>
    %148 = vector.extract_strided_slice %9 {offsets = [7, 0, 0], sizes = [1, 8, 128], strides = [1, 1, 1]} : vector<8x8x128xf32> to vector<1x8x128xf32>
    %149 = vector.shape_cast %148 : vector<1x8x128xf32> to vector<8x128xf32>
    %cst_23 = arith.constant dense<0.000000e+00> : vector<8x128xf32>
    %150 = tpu.matmul %147, %12, %cst_23 {dimension_numbers = #tpu.dot_dimension_numbers<[1], [0], [0], [1], [0, 0, 1, 1], [], []>} : vector<8x32xf32>, vector<32x128xf32>, vector<8x128xf32> -> vector<8x128xf32>
    %151 = arith.addf %149, %150 : vector<8x128xf32>
    %152 = arith.negf %151 : vector<8x128xf32>
    %153 = math.exp %152 : vector<8x128xf32>
    %cst_24 = arith.constant 1.000000e+00 : f32
    %154 = vector.broadcast %cst_24 : f32 to vector<8x128xf32>
    %155 = arith.addf %154, %153 : vector<8x128xf32>
    %156 = arith.divf %154, %155 : vector<8x128xf32>
    %157 = math.tanh %151 : vector<8x128xf32>
    %158 = vector.extract_strided_slice %156 {offsets = [0, 32], sizes = [8, 32], strides = [1, 1]} : vector<8x128xf32> to vector<8x32xf32>
    %159 = arith.mulf %158, %144 : vector<8x32xf32>
    %160 = vector.extract_strided_slice %156 {offsets = [0, 0], sizes = [8, 32], strides = [1, 1]} : vector<8x128xf32> to vector<8x32xf32>
    %161 = vector.extract_strided_slice %157 {offsets = [0, 64], sizes = [8, 32], strides = [1, 1]} : vector<8x128xf32> to vector<8x32xf32>
    %162 = arith.mulf %160, %161 : vector<8x32xf32>
    %163 = arith.addf %159, %162 : vector<8x32xf32>
    %164 = vector.extract_strided_slice %156 {offsets = [0, 96], sizes = [8, 32], strides = [1, 1]} : vector<8x128xf32> to vector<8x32xf32>
    %165 = math.tanh %163 : vector<8x32xf32>
    %166 = arith.mulf %164, %165 : vector<8x32xf32>
    %167 = arith.truncf %166 : vector<8x32xf32> to vector<8x32xbf16>
    %c64 = arith.constant 64 : index
    %c0_25 = arith.constant 0 : index
    %168 = vector.load %arg2[%c64, %c0_25] : memref<336x256xbf16, #tpu.memory_space<vmem>>, vector<32x160xbf16>
    %cst_26 = arith.constant dense<0.000000e+00> : vector<8x160xf32>
    %169 = tpu.matmul %167, %168, %cst_26 {dimension_numbers = #tpu.dot_dimension_numbers<[1], [0], [0], [1], [0, 0, 1, 1], [], []>} : vector<8x32xbf16>, vector<32x160xbf16>, vector<8x160xf32> -> vector<8x160xf32>
    %c8 = arith.constant 8 : index
    %c0_27 = arith.constant 0 : index
    %170 = vector.load %arg3[%c8, %c0_27] : memref<64x256xf32, #tpu.memory_space<vmem>>, vector<1x160xf32>
    %171 = vector.broadcast %170 : vector<1x160xf32> to vector<8x160xf32>
    %172 = arith.addf %169, %171 : vector<8x160xf32>
    %173 = vector.extract_strided_slice %172 {offsets = [0, 0], sizes = [8, 128], strides = [1, 1]} : vector<8x160xf32> to vector<8x128xf32>
    %174 = vector.extract_strided_slice %172 {offsets = [0, 128], sizes = [8, 32], strides = [1, 1]} : vector<8x160xf32> to vector<8x32xf32>
    %175 = vector.shape_cast %173 : vector<8x128xf32> to vector<1x8x128xf32>
    %176 = vector.broadcast %175 : vector<1x8x128xf32> to vector<8x8x128xf32>
    %177 = arith.addf %10, %176 : vector<8x8x128xf32>
    %178 = arith.negf %177 : vector<8x8x128xf32>
    %179 = math.exp %178 : vector<8x8x128xf32>
    %cst_28 = arith.constant 1.000000e+00 : f32
    %180 = vector.broadcast %cst_28 : f32 to vector<8x8x128xf32>
    %181 = arith.addf %180, %179 : vector<8x8x128xf32>
    %182 = arith.divf %180, %181 : vector<8x8x128xf32>
    %183 = math.tanh %177 : vector<8x8x128xf32>
    %184 = vector.extract_strided_slice %182 {offsets = [0, 0, 32], sizes = [8, 8, 32], strides = [1, 1, 1]} : vector<8x8x128xf32> to vector<8x8x32xf32>
    %185 = vector.extract_strided_slice %182 {offsets = [0, 0, 0], sizes = [8, 8, 32], strides = [1, 1, 1]} : vector<8x8x128xf32> to vector<8x8x32xf32>
    %186 = vector.extract_strided_slice %183 {offsets = [0, 0, 64], sizes = [8, 8, 32], strides = [1, 1, 1]} : vector<8x8x128xf32> to vector<8x8x32xf32>
    %187 = arith.mulf %185, %186 : vector<8x8x32xf32>
    %188 = vector.extract_strided_slice %182 {offsets = [0, 0, 96], sizes = [8, 8, 32], strides = [1, 1, 1]} : vector<8x8x128xf32> to vector<8x8x32xf32>
    %cst_29 = arith.constant 0.000000e+00 : f32
    %189 = vector.broadcast %cst_29 : f32 to vector<8x32xf32>
    %190 = vector.extract_strided_slice %184 {offsets = [7, 0, 0], sizes = [1, 8, 32], strides = [1, 1, 1]} : vector<8x8x32xf32> to vector<1x8x32xf32>
    %191 = vector.shape_cast %190 : vector<1x8x32xf32> to vector<8x32xf32>
    %192 = arith.mulf %191, %189 : vector<8x32xf32>
    %193 = vector.extract_strided_slice %187 {offsets = [7, 0, 0], sizes = [1, 8, 32], strides = [1, 1, 1]} : vector<8x8x32xf32> to vector<1x8x32xf32>
    %194 = vector.shape_cast %193 : vector<1x8x32xf32> to vector<8x32xf32>
    %195 = arith.addf %192, %194 : vector<8x32xf32>
    %196 = vector.extract_strided_slice %188 {offsets = [7, 0, 0], sizes = [1, 8, 32], strides = [1, 1, 1]} : vector<8x8x32xf32> to vector<1x8x32xf32>
    %197 = vector.shape_cast %196 : vector<1x8x32xf32> to vector<8x32xf32>
    %198 = math.tanh %195 : vector<8x32xf32>
    %199 = arith.mulf %197, %198 : vector<8x32xf32>
    %200 = vector.extract_strided_slice %184 {offsets = [6, 0, 0], sizes = [1, 8, 32], strides = [1, 1, 1]} : vector<8x8x32xf32> to vector<1x8x32xf32>
    %201 = vector.shape_cast %200 : vector<1x8x32xf32> to vector<8x32xf32>
    %202 = arith.mulf %201, %195 : vector<8x32xf32>
    %203 = vector.extract_strided_slice %187 {offsets = [6, 0, 0], sizes = [1, 8, 32], strides = [1, 1, 1]} : vector<8x8x32xf32> to vector<1x8x32xf32>
    %204 = vector.shape_cast %203 : vector<1x8x32xf32> to vector<8x32xf32>
    %205 = arith.addf %202, %204 : vector<8x32xf32>
    %206 = vector.extract_strided_slice %188 {offsets = [6, 0, 0], sizes = [1, 8, 32], strides = [1, 1, 1]} : vector<8x8x32xf32> to vector<1x8x32xf32>
    %207 = vector.shape_cast %206 : vector<1x8x32xf32> to vector<8x32xf32>
    %208 = math.tanh %205 : vector<8x32xf32>
    %209 = arith.mulf %207, %208 : vector<8x32xf32>
    %210 = vector.extract_strided_slice %184 {offsets = [5, 0, 0], sizes = [1, 8, 32], strides = [1, 1, 1]} : vector<8x8x32xf32> to vector<1x8x32xf32>
    %211 = vector.shape_cast %210 : vector<1x8x32xf32> to vector<8x32xf32>
    %212 = arith.mulf %211, %205 : vector<8x32xf32>
    %213 = vector.extract_strided_slice %187 {offsets = [5, 0, 0], sizes = [1, 8, 32], strides = [1, 1, 1]} : vector<8x8x32xf32> to vector<1x8x32xf32>
    %214 = vector.shape_cast %213 : vector<1x8x32xf32> to vector<8x32xf32>
    %215 = arith.addf %212, %214 : vector<8x32xf32>
    %216 = vector.extract_strided_slice %188 {offsets = [5, 0, 0], sizes = [1, 8, 32], strides = [1, 1, 1]} : vector<8x8x32xf32> to vector<1x8x32xf32>
    %217 = vector.shape_cast %216 : vector<1x8x32xf32> to vector<8x32xf32>
    %218 = math.tanh %215 : vector<8x32xf32>
    %219 = arith.mulf %217, %218 : vector<8x32xf32>
    %220 = vector.extract_strided_slice %184 {offsets = [4, 0, 0], sizes = [1, 8, 32], strides = [1, 1, 1]} : vector<8x8x32xf32> to vector<1x8x32xf32>
    %221 = vector.shape_cast %220 : vector<1x8x32xf32> to vector<8x32xf32>
    %222 = arith.mulf %221, %215 : vector<8x32xf32>
    %223 = vector.extract_strided_slice %187 {offsets = [4, 0, 0], sizes = [1, 8, 32], strides = [1, 1, 1]} : vector<8x8x32xf32> to vector<1x8x32xf32>
    %224 = vector.shape_cast %223 : vector<1x8x32xf32> to vector<8x32xf32>
    %225 = arith.addf %222, %224 : vector<8x32xf32>
    %226 = vector.extract_strided_slice %188 {offsets = [4, 0, 0], sizes = [1, 8, 32], strides = [1, 1, 1]} : vector<8x8x32xf32> to vector<1x8x32xf32>
    %227 = vector.shape_cast %226 : vector<1x8x32xf32> to vector<8x32xf32>
    %228 = math.tanh %225 : vector<8x32xf32>
    %229 = arith.mulf %227, %228 : vector<8x32xf32>
    %230 = vector.extract_strided_slice %184 {offsets = [3, 0, 0], sizes = [1, 8, 32], strides = [1, 1, 1]} : vector<8x8x32xf32> to vector<1x8x32xf32>
    %231 = vector.shape_cast %230 : vector<1x8x32xf32> to vector<8x32xf32>
    %232 = arith.mulf %231, %225 : vector<8x32xf32>
    %233 = vector.extract_strided_slice %187 {offsets = [3, 0, 0], sizes = [1, 8, 32], strides = [1, 1, 1]} : vector<8x8x32xf32> to vector<1x8x32xf32>
    %234 = vector.shape_cast %233 : vector<1x8x32xf32> to vector<8x32xf32>
    %235 = arith.addf %232, %234 : vector<8x32xf32>
    %236 = vector.extract_strided_slice %188 {offsets = [3, 0, 0], sizes = [1, 8, 32], strides = [1, 1, 1]} : vector<8x8x32xf32> to vector<1x8x32xf32>
    %237 = vector.shape_cast %236 : vector<1x8x32xf32> to vector<8x32xf32>
    %238 = math.tanh %235 : vector<8x32xf32>
    %239 = arith.mulf %237, %238 : vector<8x32xf32>
    %240 = vector.extract_strided_slice %184 {offsets = [2, 0, 0], sizes = [1, 8, 32], strides = [1, 1, 1]} : vector<8x8x32xf32> to vector<1x8x32xf32>
    %241 = vector.shape_cast %240 : vector<1x8x32xf32> to vector<8x32xf32>
    %242 = arith.mulf %241, %235 : vector<8x32xf32>
    %243 = vector.extract_strided_slice %187 {offsets = [2, 0, 0], sizes = [1, 8, 32], strides = [1, 1, 1]} : vector<8x8x32xf32> to vector<1x8x32xf32>
    %244 = vector.shape_cast %243 : vector<1x8x32xf32> to vector<8x32xf32>
    %245 = arith.addf %242, %244 : vector<8x32xf32>
    %246 = vector.extract_strided_slice %188 {offsets = [2, 0, 0], sizes = [1, 8, 32], strides = [1, 1, 1]} : vector<8x8x32xf32> to vector<1x8x32xf32>
    %247 = vector.shape_cast %246 : vector<1x8x32xf32> to vector<8x32xf32>
    %248 = math.tanh %245 : vector<8x32xf32>
    %249 = arith.mulf %247, %248 : vector<8x32xf32>
    %250 = vector.extract_strided_slice %184 {offsets = [1, 0, 0], sizes = [1, 8, 32], strides = [1, 1, 1]} : vector<8x8x32xf32> to vector<1x8x32xf32>
    %251 = vector.shape_cast %250 : vector<1x8x32xf32> to vector<8x32xf32>
    %252 = arith.mulf %251, %245 : vector<8x32xf32>
    %253 = vector.extract_strided_slice %187 {offsets = [1, 0, 0], sizes = [1, 8, 32], strides = [1, 1, 1]} : vector<8x8x32xf32> to vector<1x8x32xf32>
    %254 = vector.shape_cast %253 : vector<1x8x32xf32> to vector<8x32xf32>
    %255 = arith.addf %252, %254 : vector<8x32xf32>
    %256 = vector.extract_strided_slice %188 {offsets = [1, 0, 0], sizes = [1, 8, 32], strides = [1, 1, 1]} : vector<8x8x32xf32> to vector<1x8x32xf32>
    %257 = vector.shape_cast %256 : vector<1x8x32xf32> to vector<8x32xf32>
    %258 = math.tanh %255 : vector<8x32xf32>
    %259 = arith.mulf %257, %258 : vector<8x32xf32>
    %260 = vector.extract_strided_slice %184 {offsets = [0, 0, 0], sizes = [1, 8, 32], strides = [1, 1, 1]} : vector<8x8x32xf32> to vector<1x8x32xf32>
    %261 = vector.shape_cast %260 : vector<1x8x32xf32> to vector<8x32xf32>
    %262 = arith.mulf %261, %255 : vector<8x32xf32>
    %263 = vector.extract_strided_slice %187 {offsets = [0, 0, 0], sizes = [1, 8, 32], strides = [1, 1, 1]} : vector<8x8x32xf32> to vector<1x8x32xf32>
    %264 = vector.shape_cast %263 : vector<1x8x32xf32> to vector<8x32xf32>
    %265 = arith.addf %262, %264 : vector<8x32xf32>
    %266 = vector.extract_strided_slice %188 {offsets = [0, 0, 0], sizes = [1, 8, 32], strides = [1, 1, 1]} : vector<8x8x32xf32> to vector<1x8x32xf32>
    %267 = vector.shape_cast %266 : vector<1x8x32xf32> to vector<8x32xf32>
    %268 = math.tanh %265 : vector<8x32xf32>
    %269 = arith.mulf %267, %268 : vector<8x32xf32>
    %270 = tpu.concatenate %33, %52, %71, %90, %109, %128, %147, %166 in 0 : vector<8x32xf32>, vector<8x32xf32>, vector<8x32xf32>, vector<8x32xf32>, vector<8x32xf32>, vector<8x32xf32>, vector<8x32xf32>, vector<8x32xf32> -> vector<64x32xf32>
    %271 = tpu.concatenate %269, %259, %249, %239, %229, %219, %209, %199 in 0 : vector<8x32xf32>, vector<8x32xf32>, vector<8x32xf32>, vector<8x32xf32>, vector<8x32xf32>, vector<8x32xf32>, vector<8x32xf32>, vector<8x32xf32> -> vector<64x32xf32>
    %272 = vector.shape_cast %270 : vector<64x32xf32> to vector<8x8x32xf32>
    %273 = vector.shape_cast %271 : vector<64x32xf32> to vector<8x8x32xf32>
    %274 = arith.truncf %270 : vector<64x32xf32> to vector<64x32xbf16>
    %c96 = arith.constant 96 : index
    %c0_30 = arith.constant 0 : index
    %275 = vector.load %arg2[%c96, %c0_30] : memref<336x256xbf16, #tpu.memory_space<vmem>>, vector<32x32xbf16>
    %cst_31 = arith.constant dense<0.000000e+00> : vector<64x32xf32>
    %276 = tpu.matmul %274, %275, %cst_31 {dimension_numbers = #tpu.dot_dimension_numbers<[1], [0], [0], [1], [0, 0, 1, 1], [], []>} : vector<64x32xbf16>, vector<32x32xbf16>, vector<64x32xf32> -> vector<64x32xf32>
    %277 = arith.truncf %271 : vector<64x32xf32> to vector<64x32xbf16>
    %c128 = arith.constant 128 : index
    %c0_32 = arith.constant 0 : index
    %278 = vector.load %arg2[%c128, %c0_32] : memref<336x256xbf16, #tpu.memory_space<vmem>>, vector<32x32xbf16>
    %cst_33 = arith.constant dense<0.000000e+00> : vector<64x32xf32>
    %279 = tpu.matmul %277, %278, %cst_33 {dimension_numbers = #tpu.dot_dimension_numbers<[1], [0], [0], [1], [0, 0, 1, 1], [], []>} : vector<64x32xbf16>, vector<32x32xbf16>, vector<64x32xf32> -> vector<64x32xf32>
    %280 = arith.addf %276, %279 : vector<64x32xf32>
    %c16 = arith.constant 16 : index
    %c0_34 = arith.constant 0 : index
    %281 = vector.load %arg3[%c16, %c0_34] : memref<64x256xf32, #tpu.memory_space<vmem>>, vector<1x32xf32>
    %282 = vector.broadcast %281 : vector<1x32xf32> to vector<64x32xf32>
    %283 = arith.addf %280, %282 : vector<64x32xf32>
    %284 = arith.truncf %174 : vector<8x32xf32> to vector<8x32xbf16>
    %c160 = arith.constant 160 : index
    %c0_35 = arith.constant 0 : index
    %285 = vector.load %arg2[%c160, %c0_35] : memref<336x256xbf16, #tpu.memory_space<vmem>>, vector<32x32xbf16>
    %cst_36 = arith.constant dense<0.000000e+00> : vector<8x32xf32>
    %286 = tpu.matmul %284, %285, %cst_36 {dimension_numbers = #tpu.dot_dimension_numbers<[1], [0], [0], [1], [0, 0, 1, 1], [], []>} : vector<8x32xbf16>, vector<32x32xbf16>, vector<8x32xf32> -> vector<8x32xf32>
    %c24 = arith.constant 24 : index
    %c0_37 = arith.constant 0 : index
    %287 = vector.load %arg3[%c24, %c0_37] : memref<64x256xf32, #tpu.memory_space<vmem>>, vector<1x32xf32>
    %288 = vector.broadcast %287 : vector<1x32xf32> to vector<8x32xf32>
    %289 = arith.addf %286, %288 : vector<8x32xf32>
    %290 = vector.shape_cast %283 : vector<64x32xf32> to vector<8x8x32xf32>
    %291 = vector.shape_cast %289 : vector<8x32xf32> to vector<1x8x32xf32>
    %292 = vector.broadcast %291 : vector<1x8x32xf32> to vector<8x8x32xf32>
    %293 = arith.addf %290, %292 : vector<8x8x32xf32>
    %294 = math.tanh %293 : vector<8x8x32xf32>
    %c32_38 = arith.constant 32 : index
    %c0_39 = arith.constant 0 : index
    %295 = vector.load %arg3[%c32_38, %c0_39] : memref<64x256xf32, #tpu.memory_space<vmem>>, vector<1x32xf32>
    %296 = vector.shape_cast %295 : vector<1x32xf32> to vector<1x1x32xf32>
    %297 = vector.broadcast %296 : vector<1x1x32xf32> to vector<8x8x32xf32>
    %298 = arith.mulf %294, %297 : vector<8x8x32xf32>
    %cst_40 = arith.constant dense<0.000000e+00> : vector<8x8xf32>
    %299 = vector.multi_reduction <add>, %298, %cst_40 [2] : vector<8x8x32xf32> to vector<8x8xf32>
    %300 = vector.shape_cast %299 : vector<8x8xf32> to vector<8x8x1xf32>
    %c40 = arith.constant 40 : index
    %c0_41 = arith.constant 0 : index
    %301 = vector.load %arg3[%c40, %c0_41] : memref<64x256xf32, #tpu.memory_space<vmem>>, vector<1x1xf32>
    %302 = vector.shape_cast %301 : vector<1x1xf32> to vector<1x1x1xf32>
    %303 = vector.broadcast %302 : vector<1x1x1xf32> to vector<8x8x1xf32>
    %304 = arith.addf %300, %303 : vector<8x8x1xf32>
    %cst_42 = arith.constant dense<0xFF800000> : vector<8x1xf32>
    %305 = vector.multi_reduction <maximumf>, %304, %cst_42 [0] : vector<8x8x1xf32> to vector<8x1xf32>
    %306 = vector.shape_cast %305 : vector<8x1xf32> to vector<1x8x1xf32>
    %307 = vector.broadcast %306 : vector<1x8x1xf32> to vector<8x8x1xf32>
    %308 = arith.subf %304, %307 : vector<8x8x1xf32>
    %309 = math.exp %308 : vector<8x8x1xf32>
    %cst_43 = arith.constant dense<0.000000e+00> : vector<8x1xf32>
    %310 = vector.multi_reduction <add>, %309, %cst_43 [0] : vector<8x8x1xf32> to vector<8x1xf32>
    %311 = vector.shape_cast %310 : vector<8x1xf32> to vector<1x8x1xf32>
    %312 = tpu.reciprocal %311 {approx = true} : vector<1x8x1xf32> -> vector<1x8x1xf32>
    %313 = vector.broadcast %312 : vector<1x8x1xf32> to vector<8x8x1xf32>
    %314 = arith.mulf %309, %313 : vector<8x8x1xf32>
    %315 = vector.broadcast %314 : vector<8x8x1xf32> to vector<8x8x32xf32>
    %316 = arith.mulf %315, %272 : vector<8x8x32xf32>
    %cst_44 = arith.constant dense<0.000000e+00> : vector<8x32xf32>
    %317 = vector.multi_reduction <add>, %316, %cst_44 [0] : vector<8x8x32xf32> to vector<8x32xf32>
    %318 = vector.broadcast %314 : vector<8x8x1xf32> to vector<8x8x32xf32>
    %319 = arith.mulf %318, %273 : vector<8x8x32xf32>
    %cst_45 = arith.constant dense<0.000000e+00> : vector<8x32xf32>
    %320 = vector.multi_reduction <add>, %319, %cst_45 [0] : vector<8x8x32xf32> to vector<8x32xf32>
    %321 = arith.truncf %174 : vector<8x32xf32> to vector<8x32xbf16>
    %c192 = arith.constant 192 : index
    %c0_46 = arith.constant 0 : index
    %322 = vector.load %arg2[%c192, %c0_46] : memref<336x256xbf16, #tpu.memory_space<vmem>>, vector<32x48xbf16>
    %cst_47 = arith.constant dense<0.000000e+00> : vector<8x48xf32>
    %323 = tpu.matmul %321, %322, %cst_47 {dimension_numbers = #tpu.dot_dimension_numbers<[1], [0], [0], [1], [0, 0, 1, 1], [], []>} : vector<8x32xbf16>, vector<32x48xbf16>, vector<8x48xf32> -> vector<8x48xf32>
    %324 = arith.truncf %317 : vector<8x32xf32> to vector<8x32xbf16>
    %c224 = arith.constant 224 : index
    %c0_48 = arith.constant 0 : index
    %325 = vector.load %arg2[%c224, %c0_48] : memref<336x256xbf16, #tpu.memory_space<vmem>>, vector<32x48xbf16>
    %cst_49 = arith.constant dense<0.000000e+00> : vector<8x48xf32>
    %326 = tpu.matmul %324, %325, %cst_49 {dimension_numbers = #tpu.dot_dimension_numbers<[1], [0], [0], [1], [0, 0, 1, 1], [], []>} : vector<8x32xbf16>, vector<32x48xbf16>, vector<8x48xf32> -> vector<8x48xf32>
    %327 = arith.addf %323, %326 : vector<8x48xf32>
    %328 = arith.truncf %320 : vector<8x32xf32> to vector<8x32xbf16>
    %c256 = arith.constant 256 : index
    %c0_50 = arith.constant 0 : index
    %329 = vector.load %arg2[%c256, %c0_50] : memref<336x256xbf16, #tpu.memory_space<vmem>>, vector<32x48xbf16>
    %cst_51 = arith.constant dense<0.000000e+00> : vector<8x48xf32>
    %330 = tpu.matmul %328, %329, %cst_51 {dimension_numbers = #tpu.dot_dimension_numbers<[1], [0], [0], [1], [0, 0, 1, 1], [], []>} : vector<8x32xbf16>, vector<32x48xbf16>, vector<8x48xf32> -> vector<8x48xf32>
    %331 = arith.addf %327, %330 : vector<8x48xf32>
    %c48 = arith.constant 48 : index
    %c0_52 = arith.constant 0 : index
    %332 = vector.load %arg3[%c48, %c0_52] : memref<64x256xf32, #tpu.memory_space<vmem>>, vector<1x48xf32>
    %333 = vector.broadcast %332 : vector<1x48xf32> to vector<8x48xf32>
    %334 = arith.addf %331, %333 : vector<8x48xf32>
    %335 = arith.truncf %334 : vector<8x48xf32> to vector<8x48xbf16>
    %c288 = arith.constant 288 : index
    %c0_53 = arith.constant 0 : index
    %336 = vector.load %arg2[%c288, %c0_53] : memref<336x256xbf16, #tpu.memory_space<vmem>>, vector<48x2xbf16>
    %cst_54 = arith.constant dense<0.000000e+00> : vector<8x2xf32>
    %337 = tpu.matmul %335, %336, %cst_54 {dimension_numbers = #tpu.dot_dimension_numbers<[1], [0], [0], [1], [0, 0, 1, 1], [], []>} : vector<8x48xbf16>, vector<48x2xbf16>, vector<8x2xf32> -> vector<8x2xf32>
    %c56 = arith.constant 56 : index
    %c0_55 = arith.constant 0 : index
    %338 = vector.load %arg3[%c56, %c0_55] : memref<64x256xf32, #tpu.memory_space<vmem>>, vector<1x2xf32>
    %339 = vector.broadcast %338 : vector<1x2xf32> to vector<8x2xf32>
    %340 = arith.addf %337, %339 : vector<8x2xf32>
    %341 = arith.negf %340 : vector<8x2xf32>
    %342 = math.exp %341 : vector<8x2xf32>
    %cst_56 = arith.constant 1.000000e+00 : f32
    %343 = vector.broadcast %cst_56 : f32 to vector<8x2xf32>
    %344 = arith.addf %343, %342 : vector<8x2xf32>
    %345 = arith.divf %343, %344 : vector<8x2xf32>
    %cst_57 = arith.constant 0.000000e+00 : f32
    %346 = vector.broadcast %cst_57 : f32 to vector<8x94xf32>
    %347 = tpu.concatenate %345, %166, %346 in 1 : vector<8x2xf32>, vector<8x32xf32>, vector<8x94xf32> -> vector<8x128xf32>
    %c0_58 = arith.constant 0 : index
    %c0_59 = arith.constant 0 : index
    %348 = vector.load %arg4[%c0_58, %c0_59] : memref<8x128xf32, #tpu.memory_space<vmem>>, vector<8x128xf32>
    tpu.vector_store %arg4[%c0_58, %c0_59], %347 {strides = array<i32>} : memref<8x128xf32, #tpu.memory_space<vmem>>, vector<8x128xf32>,
    return
  }
  func.func @transform_0(%arg0: i32) -> (i32, i32, i32) {
    %c0_i32 = arith.constant 0 : i32
    %c0_i32_0 = arith.constant 0 : i32
    %c0_i32_1 = arith.constant 0 : i32
    return %c0_i32, %arg0, %c0_i32_0 : i32, i32, i32
  }
  func.func @transform_1(%arg0: i32) -> (i32, i32) {
    %c0_i32 = arith.constant 0 : i32
    %c0_i32_0 = arith.constant 0 : i32
    %c0_i32_1 = arith.constant 0 : i32
    return %c0_i32, %c0_i32_0 : i32, i32
  }
  func.func @transform_2(%arg0: i32) -> (i32, i32) {
    %c0_i32 = arith.constant 0 : i32
    %c0_i32_0 = arith.constant 0 : i32
    %c0_i32_1 = arith.constant 0 : i32
    return %c0_i32, %c0_i32_0 : i32, i32
  }
  func.func @transform_3(%arg0: i32) -> (i32, i32) {
    %c0_i32 = arith.constant 0 : i32
    %c0_i32_0 = arith.constant 0 : i32
    return %arg0, %c0_i32 : i32, i32
  }
}

</mosaic_0001>

<llo_original>
// kernel: tpu_custom_call.1
$region0: #{tpu_custom_call.1}
  #allocation0 [shape = 'u32[]', space=smem, size = 0x4, offset = 0x4, fixed_abs, tag = 'smem constant byte address 0x4 - core index']
  #allocation1 [shape = 'u32[144,128]{1,0:T(1,128)}', space=vmem, size = 0x12000, scoped, tag = 'internal scratch']
  %s0 = inlined_call_operand.hbm [shape: f32[8,8,32], index: 0, kind: input, shape index: {}]
  %s1 = inlined_call_operand.hbm [shape: bf16[336,256], index: 1, kind: input, shape index: {}]
  %s2 = inlined_call_operand.hbm [shape: f32[64,256], index: 2, kind: input, shape index: {}]
  %s3 = inlined_call_operand.hbm [shape: f32[8,128], index: 3, kind: output, shape index: {}]
  %s4 = sld [smem:[#allocation0]]
  $region34: #{tpu_custom_call.1} parent=0
    _
  %s6 = ssub.s32 1, %s4
  %s7 = scalar_select 0, %s6, %s4
  $region1: #{tpu_custom_call.1} parent=0
    #allocation2 [shape = 'u8[32768]{0}', space=vmem, size = 0x8000, scoped, tag = 'input window, operand 0, single buffered']
    #allocation3 [shape = 's32[1]{0}', space=sflag, size = 0x4, scoped, tag = 'scoped memory for tpu_custom_call.1']
    #allocation4 [shape = 's32[1]{0}', space=sflag, size = 0x4, scoped, tag = 'scoped memory for tpu_custom_call.1']
    #allocation5 [shape = 'u8[172032]{0}', space=vmem, size = 0x2a000, scoped, tag = 'input window, operand 1, single buffered']
    #allocation6 [shape = 's32[1]{0}', space=sflag, size = 0x4, scoped, tag = 'scoped memory for tpu_custom_call.1']
    #allocation7 [shape = 'u8[65536]{0}', space=vmem, size = 0x10000, scoped, tag = 'input window, operand 2, single buffered']
    #allocation8 [shape = 'u8[4096]{0}', space=vmem, size = 0x1000, scoped, tag = 'output window, operand 0, single buffered']
    %8 = vsyncpa [#allocation3], 0
    %9 = vsyncpa [#allocation6], 0
    %10 = vsyncpa [#allocation4], 0
    // Predicated region
    $region2: #{tpu_custom_call.1} parent=1 // pred_check
      _
    $region3: #{tpu_custom_call.1} parent=1 // pred_check_branch
      %12 = sbr.rel (0) target = $region5
    $region4: #{tpu_custom_call.1} parent=1 // pred_region
      %s14 = ssub.s32 1024, 1024
      %15 = vsyncadd [#allocation3], %s14
      %s16 = sshll.u32 [#allocation2], 4
      %s17 = int_to_ptr.vmem [resolvable:$true] %s16
      %22 = dma.hbm_to_vmem [thread:$0]  %s0, 1024, %s17, [#allocation3], 128, 128, 8
    $region5: #{tpu_custom_call.1} parent=1 // pred_fallthru
      _
    // Predicated region
    $region6: #{tpu_custom_call.1} parent=1 // pred_check
      _
    $region7: #{tpu_custom_call.1} parent=1 // pred_check_branch
      %24 = sbr.rel (0) target = $region9
    $region8: #{tpu_custom_call.1} parent=1 // pred_region
      %s26 = ssub.s32 5376, 5376
      %27 = vsyncadd [#allocation6], %s26
      %s28 = sshll.u32 [#allocation5], 4
      %s29 = int_to_ptr.vmem [resolvable:$true] %s28
      %34 = dma.hbm_to_vmem [thread:$0]  %s1, 5376, %s29, [#allocation6], 128, 128, 8
    $region9: #{tpu_custom_call.1} parent=1 // pred_fallthru
      _
    // Predicated region
    $region10: #{tpu_custom_call.1} parent=1 // pred_check
      _
    $region11: #{tpu_custom_call.1} parent=1 // pred_check_branch
      %36 = sbr.rel (0) target = $region13
    $region12: #{tpu_custom_call.1} parent=1 // pred_region
      %s38 = ssub.s32 2048, 2048
      %39 = vsyncadd [#allocation6], %s38
      %s40 = sshll.u32 [#allocation7], 4
      %s41 = int_to_ptr.vmem [resolvable:$true] %s40
      %46 = dma.hbm_to_vmem [thread:$0]  %s2, 2048, %s41, [#allocation6], 256, 256, 16
    $region13: #{tpu_custom_call.1} parent=1 // pred_fallthru
      _
    // Predicated region
    $region14: #{tpu_custom_call.1} parent=1 // pred_check
      _
    $region15: #{tpu_custom_call.1} parent=1 // pred_check_branch
      %48 = sbr.rel (0) target = $region17
    $region16: #{tpu_custom_call.1} parent=1 // pred_region
      %49 = dma.done [#allocation3], 1024
    $region17: #{tpu_custom_call.1} parent=1 // pred_fallthru
      _
    // Predicated region
    $region18: #{tpu_custom_call.1} parent=1 // pred_check
      _
    $region19: #{tpu_custom_call.1} parent=1 // pred_check_branch
      %51 = sbr.rel (0) target = $region21
    $region20: #{tpu_custom_call.1} parent=1 // pred_region
      %52 = dma.done [#allocation6], 5376
    $region21: #{tpu_custom_call.1} parent=1 // pred_fallthru
      _
    // Predicated region
    $region22: #{tpu_custom_call.1} parent=1 // pred_check
      _
    $region23: #{tpu_custom_call.1} parent=1 // pred_check_branch
      %54 = sbr.rel (0) target = $region25
    $region24: #{tpu_custom_call.1} parent=1 // pred_region
      %55 = dma.done [#allocation6], 2048
    $region25: #{tpu_custom_call.1} parent=1 // pred_fallthru
      _
    %v57 = vld [vmem:[#allocation2] sm:$0xff]
    %v58 = vld [vmem:[#allocation2 + $0x8] sm:$0xff]
    %v59 = vld [vmem:[#allocation2 + $0x10] sm:$0xff]
    %v60 = vld [vmem:[#allocation2 + $0x18] sm:$0xff]
    %v61 = vld [vmem:[#allocation2 + $0x20] sm:$0xff]
    %v62 = vld [vmem:[#allocation2 + $0x28] sm:$0xff]
    %v63 = vld [vmem:[#allocation2 + $0x30] sm:$0xff]
    %v64 = vld [vmem:[#allocation2 + $0x38] sm:$0xff]
    %v65 = vpack.c.bf16 %v58, %v57
    %v66 = vpack.c.bf16 %v60, %v59
    %v67 = vpack.c.bf16 %v62, %v61
    %v68 = vpack.c.bf16 %v64, %v63
    %v69 = vld [vmem:[#allocation5] sm:$0xff]
    %v70 = vld [vmem:[#allocation5 + $0x8] sm:$0xff]
    %v71 = vld [vmem:[#allocation5 + $0x10] sm:$0xff]
    %v72 = vld [vmem:[#allocation5 + $0x18] sm:$0xff]
    %v73 = vld [vmem:[#allocation7] ss:$8 sm:$0x3]
    %v75 = vlaneseq
    %v76 = vshrl.u32 %v75, 7
    %v77 = vsub.s32 0, %v76
    %v78 = vrot.slane %v73, %v77
    %v79 = vlaneseq
    %v80 = vshrl.u32 %v79, 7
    %v81 = vsub.s32 1, %v80
    %v82 = vrot.slane %v73, %v81
    %v89 = vunpack.c.l.b16 %v69
    %v90 = vunpack.c.h.b16 %v69
    %v91 = vunpack.c.l.b16 %v70
    %v92 = vunpack.c.h.b16 %v70
    %v93 = vunpack.c.l.b16 %v71
    %v94 = vunpack.c.h.b16 %v71
    %v95 = vunpack.c.l.b16 %v72
    %v96 = vunpack.c.h.b16 %v72
    %v97 = vpack.c.b16 %v91, %v89
    %v98 = vpack.c.b16 %v92, %v90
    %v99 = vpack.c.b16 %v95, %v93
    %v100 = vpack.c.b16 %v96, %v94
    %vm105 = vcmask 261120
    %v107 = vsel %vm105, %v65, 0
    %v110 = vsel %vm105, %v66, 0
    %v113 = vsel %vm105, %v67, 0
    %v116 = vsel %vm105, %v68, 0
    %118 = vmatprep.subr.bf16.mxu0 0
    %119 = vmatpush1.bf16.msra.mxu0 0
    %120 = vmatprep.subr.bf16.mxu0 0
    %121 = vmatpush1.bf16.msra.mxu0 0
    %122 = vmatprep.subr.bf16.mxu0 0
    %123 = vmatpush1.bf16.msra.mxu0 0
    %124 = vmatprep.subr.bf16.mxu0 0
    %125 = vmatpush1.bf16.msra.mxu0 0
    %126 = vmatprep.subr.bf16.mxu0 0
    %127 = vmatpush1.bf16.msra.mxu0 0
    %128 = vmatprep.subr.bf16.mxu0 0
    %129 = vmatpush1.bf16.msra.mxu0 0
    %130 = vmatprep.subr.bf16.mxu0 %v100
    %131 = vmatpush1.bf16.msra.mxu0 %v99
    %132 = vmatprep.subr.bf16.mxu0 %v98
    %133 = vmatpush1.bf16.msra.mxu0 %v97
    %134 = vmatprep.subr.bf16.mxu0 0
    %135 = vmatpush2.bf16.msra.mxu0 0
    %136 = vmatprep.subr.bf16.mxu0 0
    %137 = vmatpush2.bf16.msra.mxu0 0
    %138 = vmatprep.subr.bf16.mxu0 0
    %139 = vmatpush2.bf16.msra.mxu0 0
    %140 = vmatprep.subr.bf16.mxu0 0
    %141 = vmatpush2.bf16.msra.mxu0 0
    %142 = vmatprep.subr.bf16.mxu0 0
    %143 = vmatpush2.bf16.msra.mxu0 0
    %144 = vmatprep.subr.bf16.mxu0 0
    %145 = vmatpush2.bf16.msra.mxu0 0
    %146 = vmatprep.subr.bf16.mxu0 0
    %147 = vmatpush2.bf16.msra.mxu0 0
    %148 = vmatprep.subr.bf16.mxu0 0
    %149 = vmatpush2.bf16.msra.mxu0 0
    %150 = vmatprep.mubr.bf16.mxu0 0
    %151 = vmatmul.mubr.bf16.gmra.mxu0 %v107
    %v152 = vpop.f32.mrf.mxu0
    %v153 = vadd.f32 %v78, %v152
    %v154 = vpop.f32.mrf.mxu0
    %v155 = vadd.f32 %v82, %v154
    %v156 = vpop.f32.mrf.mxu0
    %v157 = vadd.f32 %v78, %v156
    %v158 = vpop.f32.mrf.mxu0
    %v159 = vadd.f32 %v82, %v158
    %160 = vmatprep.mubr.bf16.mxu0 0
    %161 = vmatmul.mubr.bf16.gmra.mxu0 %v110
    %v162 = vpop.f32.mrf.mxu0
    %v163 = vadd.f32 %v78, %v162
    %v164 = vpop.f32.mrf.mxu0
    %v165 = vadd.f32 %v82, %v164
    %v166 = vpop.f32.mrf.mxu0
    %v167 = vadd.f32 %v78, %v166
    %v168 = vpop.f32.mrf.mxu0
    %v169 = vadd.f32 %v82, %v168
    %170 = vmatprep.mubr.bf16.mxu0 0
    %171 = vmatmul.mubr.bf16.gmra.mxu0 %v113
    %v172 = vpop.f32.mrf.mxu0
    %v173 = vadd.f32 %v78, %v172
    %v174 = vpop.f32.mrf.mxu0
    %v175 = vadd.f32 %v82, %v174
    %v176 = vpop.f32.mrf.mxu0
    %v177 = vadd.f32 %v78, %v176
    %v178 = vpop.f32.mrf.mxu0
    %v179 = vadd.f32 %v82, %v178
    %180 = vmatprep.mubr.bf16.mxu0 0
    %181 = vmatmul.mubr.bf16.gmra.mxu0 %v116
    %v182 = vpop.f32.mrf.mxu0
    %v183 = vadd.f32 %v78, %v182
    %v184 = vpop.f32.mrf.mxu0
    %v185 = vadd.f32 %v82, %v184
    %v186 = vpop.f32.mrf.mxu0
    %v187 = vadd.f32 %v78, %v186
    %v188 = vpop.f32.mrf.mxu0
    %v189 = vadd.f32 %v82, %v188
    %190 = vdwg.mxu0
    %v191 = vld [vmem:[#allocation5 + $0x20] sm:$0xf]
    %v192 = vld [vmem:[#allocation5 + $0x28] sm:$0xf]
    %v193 = vld [vmem:[#allocation5 + $0x30] sm:$0xf]
    %v194 = vld [vmem:[#allocation5 + $0x38] sm:$0xf]
    %v195 = vunpack.c.l.bf16 %v191
    %v196 = vunpack.c.l.bf16 %v192
    %v197 = vunpack.c.l.bf16 %v193
    %v198 = vunpack.c.l.bf16 %v194
    %v200 = vsel %vm105, 0.0, 0
    %202 = vmatprep.subr.mxu0 0.0
    %203 = vmatpush1.msra.mxu0 0.0
    %204 = vmatprep.subr.mxu0 0.0
    %205 = vmatpush1.msra.mxu0 0.0
    %206 = vmatprep.subr.mxu0 0.0
    %207 = vmatpush1.msra.mxu0 0.0
    %208 = vmatprep.subr.mxu0 0.0
    %209 = vmatpush1.msra.mxu0 0.0
    %210 = vmatprep.subr.mxu0 0.0
    %211 = vmatpush1.msra.mxu0 0.0
    %212 = vmatprep.subr.mxu0 0.0
    %213 = vmatpush1.msra.mxu0 0.0
    %214 = vmatprep.subr.mxu0 0.0
    %215 = vmatpush1.msra.mxu0 0.0
    %216 = vmatprep.subr.mxu0 0.0
    %217 = vmatpush1.msra.mxu0 0.0
    %218 = vmatprep.subr.mxu0 0.0
    %219 = vmatpush1.msra.mxu0 0.0
    %220 = vmatprep.subr.mxu0 0.0
    %221 = vmatpush1.msra.mxu0 0.0
    %222 = vmatprep.subr.mxu0 0.0
    %223 = vmatpush1.msra.mxu0 0.0
    %224 = vmatprep.subr.mxu0 0.0
    %225 = vmatpush1.msra.mxu0 0.0
    %226 = vmatprep.subr.mxu0 0.0
    %227 = vmatpush1.msra.mxu0 %v198
    %228 = vmatprep.subr.mxu0 0.0
    %229 = vmatpush1.msra.mxu0 %v197
    %230 = vmatprep.subr.mxu0 0.0
    %231 = vmatpush1.msra.mxu0 %v196
    %232 = vmatprep.subr.mxu0 0.0
    %233 = vmatpush1.msra.mxu0 %v195
    %234 = vmatprep.subr.mxu0 0.0
    %235 = vmatpush2.msra.mxu0 0.0
    %236 = vmatprep.subr.mxu0 0.0
    %237 = vmatpush2.msra.mxu0 0.0
    %238 = vmatprep.subr.mxu0 0.0
    %239 = vmatpush2.msra.mxu0 0.0
    %240 = vmatprep.subr.mxu0 0.0
    %241 = vmatpush2.msra.mxu0 0.0
    %242 = vmatprep.subr.mxu0 0.0
    %243 = vmatpush2.msra.mxu0 0.0
    %244 = vmatprep.subr.mxu0 0.0
    %245 = vmatpush2.msra.mxu0 0.0
    %246 = vmatprep.subr.mxu0 0.0
    %247 = vmatpush2.msra.mxu0 0.0
    %248 = vmatprep.subr.mxu0 0.0
    %249 = vmatpush2.msra.mxu0 0.0
    %250 = vmatprep.subr.mxu0 0.0
    %251 = vmatpush2.msra.mxu0 0.0
    %252 = vmatprep.subr.mxu0 0.0
    %253 = vmatpush2.msra.mxu0 0.0
    %254 = vmatprep.subr.mxu0 0.0
    %255 = vmatpush2.msra.mxu0 0.0
    %256 = vmatprep.subr.mxu0 0.0
    %257 = vmatpush2.msra.mxu0 0.0
    %258 = vmatprep.subr.mxu0 0.0
    %259 = vmatpush2.msra.mxu0 0.0
    %260 = vmatprep.subr.mxu0 0.0
    %261 = vmatpush2.msra.mxu0 0.0
    %262 = vmatprep.subr.mxu0 0.0
    %263 = vmatpush2.msra.mxu0 0.0
    %264 = vmatprep.subr.mxu0 0.0
    %265 = vmatpush2.msra.mxu0 0.0
    %266 = vmatprep.mubr.f32.mxu0 0.0
    %267 = vmatmul.mubr.f32.gmra.mxu0 %v200
    %v268 = vpop.f32.mrf.mxu0
    %v269 = vadd.f32 0.0, %v268
    %v270 = vpop.f32.mrf.mxu0
    %271 = vdwg.mxu0
    %v272 = vadd.f32 %v153, %v269
    %v273 = vxor.u32 %v272, 2147483648
    %v274 = vmul.f32 %v273, 1.442695
    %v275 = vpow.pop %v274
    %v276 = vadd.f32 %v275, 1.0
    %v277 = vrcp.pop %v276
    %v278 = vmul.f32 1.0, %v277
    %v279 = vtanh.pop %v272
    %v280 = vmul.f32 %v278, 0.0
    %282 = vrot.lane.b32.xlu0 %v279, 64
    %v283 = vpop.permute.xlu0 %282
    %v285 = vmul.f32 %v278, %v283
    %287 = vrot.lane.b32.xlu0 %v285, 32
    %v288 = vpop.permute.xlu0 %287
    %v290 = vadd.f32 %v280, %v288
    %v291 = vtanh.pop %v290
    %293 = vrot.lane.b32.xlu0 %v291, 64
    %v294 = vpop.permute.xlu0 %293
    %v296 = vmul.f32 %v278, %v294
    %298 = vrot.lane.b32.xlu0 %v296, 32
    %v299 = vpop.permute.xlu0 %298
    %v300 = vsel %vm105, %v299, 0
    %302 = vmatprep.subr.mxu0 0.0
    %303 = vmatpush1.msra.mxu0 0.0
    %304 = vmatprep.subr.mxu0 0.0
    %305 = vmatpush1.msra.mxu0 0.0
    %306 = vmatprep.subr.mxu0 0.0
    %307 = vmatpush1.msra.mxu0 0.0
    %308 = vmatprep.subr.mxu0 0.0
    %309 = vmatpush1.msra.mxu0 0.0
    %310 = vmatprep.subr.mxu0 0.0
    %311 = vmatpush1.msra.mxu0 0.0
    %312 = vmatprep.subr.mxu0 0.0
    %313 = vmatpush1.msra.mxu0 0.0
    %314 = vmatprep.subr.mxu0 0.0
    %315 = vmatpush1.msra.mxu0 0.0
    %316 = vmatprep.subr.mxu0 0.0
    %317 = vmatpush1.msra.mxu0 0.0
    %318 = vmatprep.subr.mxu0 0.0
    %319 = vmatpush1.msra.mxu0 0.0
    %320 = vmatprep.subr.mxu0 0.0
    %321 = vmatpush1.msra.mxu0 0.0
    %322 = vmatprep.subr.mxu0 0.0
    %323 = vmatpush1.msra.mxu0 0.0
    %324 = vmatprep.subr.mxu0 0.0
    %325 = vmatpush1.msra.mxu0 0.0
    %326 = vmatprep.subr.mxu0 0.0
    %327 = vmatpush1.msra.mxu0 %v198
    %328 = vmatprep.subr.mxu0 0.0
    %329 = vmatpush1.msra.mxu0 %v197
    %330 = vmatprep.subr.mxu0 0.0
    %331 = vmatpush1.msra.mxu0 %v196
    %332 = vmatprep.subr.mxu0 0.0
    %333 = vmatpush1.msra.mxu0 %v195
    %334 = vmatprep.subr.mxu0 0.0
    %335 = vmatpush2.msra.mxu0 0.0
    %336 = vmatprep.subr.mxu0 0.0
    %337 = vmatpush2.msra.mxu0 0.0
    %338 = vmatprep.subr.mxu0 0.0
    %339 = vmatpush2.msra.mxu0 0.0
    %340 = vmatprep.subr.mxu0 0.0
    %341 = vmatpush2.msra.mxu0 0.0
    %342 = vmatprep.subr.mxu0 0.0
    %343 = vmatpush2.msra.mxu0 0.0
    %344 = vmatprep.subr.mxu0 0.0
    %345 = vmatpush2.msra.mxu0 0.0
    %346 = vmatprep.subr.mxu0 0.0
    %347 = vmatpush2.msra.mxu0 0.0
    %348 = vmatprep.subr.mxu0 0.0
    %349 = vmatpush2.msra.mxu0 0.0
    %350 = vmatprep.subr.mxu0 0.0
    %351 = vmatpush2.msra.mxu0 0.0
    %352 = vmatprep.subr.mxu0 0.0
    %353 = vmatpush2.msra.mxu0 0.0
    %354 = vmatprep.subr.mxu0 0.0
    %355 = vmatpush2.msra.mxu0 0.0
    %356 = vmatprep.subr.mxu0 0.0
    %357 = vmatpush2.msra.mxu0 0.0
    %358 = vmatprep.subr.mxu0 0.0
    %359 = vmatpush2.msra.mxu0 0.0
    %360 = vmatprep.subr.mxu0 0.0
    %361 = vmatpush2.msra.mxu0 0.0
    %362 = vmatprep.subr.mxu0 0.0
    %363 = vmatpush2.msra.mxu0 0.0
    %364 = vmatprep.subr.mxu0 0.0
    %365 = vmatpush2.msra.mxu0 0.0
    %366 = vmatprep.mubr.f32.mxu0 0.0
    %367 = vmatmul.mubr.f32.gmra.mxu0 %v300
    %v368 = vpop.f32.mrf.mxu0
    %v369 = vadd.f32 0.0, %v368
    %v370 = vpop.f32.mrf.mxu0
    %371 = vdwg.mxu0
    %v372 = vadd.f32 %v157, %v369
    %v373 = vxor.u32 %v372, 2147483648
    %v374 = vmul.f32 %v373, 1.442695
    %v375 = vpow.pop %v374
    %v376 = vadd.f32 %v375, 1.0
    %v377 = vrcp.pop %v376
    %v378 = vmul.f32 1.0, %v377
    %v379 = vtanh.pop %v372
    %v380 = vmul.f32 %v378, %v290
    %382 = vrot.lane.b32.xlu0 %v379, 64
    %v383 = vpop.permute.xlu0 %382
    %v385 = vmul.f32 %v378, %v383
    %387 = vrot.lane.b32.xlu0 %v385, 32
    %v388 = vpop.permute.xlu0 %387
    %v390 = vadd.f32 %v380, %v388
    %v391 = vtanh.pop %v390
    %393 = vrot.lane.b32.xlu0 %v391, 64
    %v394 = vpop.permute.xlu0 %393
    %v396 = vmul.f32 %v378, %v394
    %398 = vrot.lane.b32.xlu0 %v396, 32
    %v399 = vpop.permute.xlu0 %398
    %v400 = vsel %vm105, %v399, 0
    %402 = vmatprep.subr.mxu0 0.0
    %403 = vmatpush1.msra.mxu0 0.0
    %404 = vmatprep.subr.mxu0 0.0
    %405 = vmatpush1.msra.mxu0 0.0
    %406 = vmatprep.subr.mxu0 0.0
    %407 = vmatpush1.msra.mxu0 0.0
    %408 = vmatprep.subr.mxu0 0.0
    %409 = vmatpush1.msra.mxu0 0.0
    %410 = vmatprep.subr.mxu0 0.0
    %411 = vmatpush1.msra.mxu0 0.0
    %412 = vmatprep.subr.mxu0 0.0
    %413 = vmatpush1.msra.mxu0 0.0
    %414 = vmatprep.subr.mxu0 0.0
    %415 = vmatpush1.msra.mxu0 0.0
    %416 = vmatprep.subr.mxu0 0.0
    %417 = vmatpush1.msra.mxu0 0.0
    %418 = vmatprep.subr.mxu0 0.0
    %419 = vmatpush1.msra.mxu0 0.0
    %420 = vmatprep.subr.mxu0 0.0
    %421 = vmatpush1.msra.mxu0 0.0
    %422 = vmatprep.subr.mxu0 0.0
    %423 = vmatpush1.msra.mxu0 0.0
    %424 = vmatprep.subr.mxu0 0.0
    %425 = vmatpush1.msra.mxu0 0.0
    %426 = vmatprep.subr.mxu0 0.0
    %427 = vmatpush1.msra.mxu0 %v198
    %428 = vmatprep.subr.mxu0 0.0
    %429 = vmatpush1.msra.mxu0 %v197
    %430 = vmatprep.subr.mxu0 0.0
    %431 = vmatpush1.msra.mxu0 %v196
    %432 = vmatprep.subr.mxu0 0.0
    %433 = vmatpush1.msra.mxu0 %v195
    %434 = vmatprep.subr.mxu0 0.0
    %435 = vmatpush2.msra.mxu0 0.0
    %436 = vmatprep.subr.mxu0 0.0
    %437 = vmatpush2.msra.mxu0 0.0
    %438 = vmatprep.subr.mxu0 0.0
    %439 = vmatpush2.msra.mxu0 0.0
    %440 = vmatprep.subr.mxu0 0.0
    %441 = vmatpush2.msra.mxu0 0.0
    %442 = vmatprep.subr.mxu0 0.0
    %443 = vmatpush2.msra.mxu0 0.0
    %444 = vmatprep.subr.mxu0 0.0
    %445 = vmatpush2.msra.mxu0 0.0
    %446 = vmatprep.subr.mxu0 0.0
    %447 = vmatpush2.msra.mxu0 0.0
    %448 = vmatprep.subr.mxu0 0.0
    %449 = vmatpush2.msra.mxu0 0.0
    %450 = vmatprep.subr.mxu0 0.0
    %451 = vmatpush2.msra.mxu0 0.0
    %452 = vmatprep.subr.mxu0 0.0
    %453 = vmatpush2.msra.mxu0 0.0
    %454 = vmatprep.subr.mxu0 0.0
    %455 = vmatpush2.msra.mxu0 0.0
    %456 = vmatprep.subr.mxu0 0.0
    %457 = vmatpush2.msra.mxu0 0.0
    %458 = vmatprep.subr.mxu0 0.0
    %459 = vmatpush2.msra.mxu0 0.0
    %460 = vmatprep.subr.mxu0 0.0
    %461 = vmatpush2.msra.mxu0 0.0
    %462 = vmatprep.subr.mxu0 0.0
    %463 = vmatpush2.msra.mxu0 0.0
    %464 = vmatprep.subr.mxu0 0.0
    %465 = vmatpush2.msra.mxu0 0.0
    %466 = vmatprep.mubr.f32.mxu0 0.0
    %467 = vmatmul.mubr.f32.gmra.mxu0 %v400
    %v468 = vpop.f32.mrf.mxu0
    %v469 = vadd.f32 0.0, %v468
    %v470 = vpop.f32.mrf.mxu0
    %471 = vdwg.mxu0
    %v472 = vadd.f32 %v163, %v469
    %v473 = vxor.u32 %v472, 2147483648
    %v474 = vmul.f32 %v473, 1.442695
    %v475 = vpow.pop %v474
    %v476 = vadd.f32 %v475, 1.0
    %v477 = vrcp.pop %v476
    %v478 = vmul.f32 1.0, %v477
    %v479 = vtanh.pop %v472
    %v480 = vmul.f32 %v478, %v390
    %482 = vrot.lane.b32.xlu0 %v479, 64
    %v483 = vpop.permute.xlu0 %482
    %v485 = vmul.f32 %v478, %v483
    %487 = vrot.lane.b32.xlu0 %v485, 32
    %v488 = vpop.permute.xlu0 %487
    %v490 = vadd.f32 %v480, %v488
    %v491 = vtanh.pop %v490
    %493 = vrot.lane.b32.xlu0 %v491, 64
    %v494 = vpop.permute.xlu0 %493
    %v496 = vmul.f32 %v478, %v494
    %498 = vrot.lane.b32.xlu0 %v496, 32
    %v499 = vpop.permute.xlu0 %498
    %v500 = vsel %vm105, %v499, 0
    %502 = vmatprep.subr.mxu0 0.0
    %503 = vmatpush1.msra.mxu0 0.0
    %504 = vmatprep.subr.mxu0 0.0
    %505 = vmatpush1.msra.mxu0 0.0
    %506 = vmatprep.subr.mxu0 0.0
    %507 = vmatpush1.msra.mxu0 0.0
    %508 = vmatprep.subr.mxu0 0.0
    %509 = vmatpush1.msra.mxu0 0.0
    %510 = vmatprep.subr.mxu0 0.0
    %511 = vmatpush1.msra.mxu0 0.0
    %512 = vmatprep.subr.mxu0 0.0
    %513 = vmatpush1.msra.mxu0 0.0
    %514 = vmatprep.subr.mxu0 0.0
    %515 = vmatpush1.msra.mxu0 0.0
    %516 = vmatprep.subr.mxu0 0.0
    %517 = vmatpush1.msra.mxu0 0.0
    %518 = vmatprep.subr.mxu0 0.0
    %519 = vmatpush1.msra.mxu0 0.0
    %520 = vmatprep.subr.mxu0 0.0
    %521 = vmatpush1.msra.mxu0 0.0
    %522 = vmatprep.subr.mxu0 0.0
    %523 = vmatpush1.msra.mxu0 0.0
    %524 = vmatprep.subr.mxu0 0.0
    %525 = vmatpush1.msra.mxu0 0.0
    %526 = vmatprep.subr.mxu0 0.0
    %527 = vmatpush1.msra.mxu0 %v198
    %528 = vmatprep.subr.mxu0 0.0
    %529 = vmatpush1.msra.mxu0 %v197
    %530 = vmatprep.subr.mxu0 0.0
    %531 = vmatpush1.msra.mxu0 %v196
    %532 = vmatprep.subr.mxu0 0.0
    %533 = vmatpush1.msra.mxu0 %v195
    %534 = vmatprep.subr.mxu0 0.0
    %535 = vmatpush2.msra.mxu0 0.0
    %536 = vmatprep.subr.mxu0 0.0
    %537 = vmatpush2.msra.mxu0 0.0
    %538 = vmatprep.subr.mxu0 0.0
    %539 = vmatpush2.msra.mxu0 0.0
    %540 = vmatprep.subr.mxu0 0.0
    %541 = vmatpush2.msra.mxu0 0.0
    %542 = vmatprep.subr.mxu0 0.0
    %543 = vmatpush2.msra.mxu0 0.0
    %544 = vmatprep.subr.mxu0 0.0
    %545 = vmatpush2.msra.mxu0 0.0
    %546 = vmatprep.subr.mxu0 0.0
    %547 = vmatpush2.msra.mxu0 0.0
    %548 = vmatprep.subr.mxu0 0.0
    %549 = vmatpush2.msra.mxu0 0.0
    %550 = vmatprep.subr.mxu0 0.0
    %551 = vmatpush2.msra.mxu0 0.0
    %552 = vmatprep.subr.mxu0 0.0
    %553 = vmatpush2.msra.mxu0 0.0
    %554 = vmatprep.subr.mxu0 0.0
    %555 = vmatpush2.msra.mxu0 0.0
    %556 = vmatprep.subr.mxu0 0.0
    %557 = vmatpush2.msra.mxu0 0.0
    %558 = vmatprep.subr.mxu0 0.0
    %559 = vmatpush2.msra.mxu0 0.0
    %560 = vmatprep.subr.mxu0 0.0
    %561 = vmatpush2.msra.mxu0 0.0
    %562 = vmatprep.subr.mxu0 0.0
    %563 = vmatpush2.msra.mxu0 0.0
    %564 = vmatprep.subr.mxu0 0.0
    %565 = vmatpush2.msra.mxu0 0.0
    %566 = vmatprep.mubr.f32.mxu0 0.0
    %567 = vmatmul.mubr.f32.gmra.mxu0 %v500
    %v568 = vpop.f32.mrf.mxu0
    %v569 = vadd.f32 0.0, %v568
    %v570 = vpop.f32.mrf.mxu0
    %571 = vdwg.mxu0
    %v572 = vadd.f32 %v167, %v569
    %v573 = vxor.u32 %v572, 2147483648
    %v574 = vmul.f32 %v573, 1.442695
    %v575 = vpow.pop %v574
    %v576 = vadd.f32 %v575, 1.0
    %v577 = vrcp.pop %v576
    %v578 = vmul.f32 1.0, %v577
    %v579 = vtanh.pop %v572
    %v580 = vmul.f32 %v578, %v490
    %582 = vrot.lane.b32.xlu0 %v579, 64
    %v583 = vpop.permute.xlu0 %582
    %v585 = vmul.f32 %v578, %v583
    %587 = vrot.lane.b32.xlu0 %v585, 32
    %v588 = vpop.permute.xlu0 %587
    %v590 = vadd.f32 %v580, %v588
    %v591 = vtanh.pop %v590
    %593 = vrot.lane.b32.xlu0 %v591, 64
    %v594 = vpop.permute.xlu0 %593
    %v596 = vmul.f32 %v578, %v594
    %598 = vrot.lane.b32.xlu0 %v596, 32
    %v599 = vpop.permute.xlu0 %598
    %v600 = vsel %vm105, %v599, 0
    %602 = vmatprep.subr.mxu0 0.0
    %603 = vmatpush1.msra.mxu0 0.0
    %604 = vmatprep.subr.mxu0 0.0
    %605 = vmatpush1.msra.mxu0 0.0
    %606 = vmatprep.subr.mxu0 0.0
    %607 = vmatpush1.msra.mxu0 0.0
    %608 = vmatprep.subr.mxu0 0.0
    %609 = vmatpush1.msra.mxu0 0.0
    %610 = vmatprep.subr.mxu0 0.0
    %611 = vmatpush1.msra.mxu0 0.0
    %612 = vmatprep.subr.mxu0 0.0
    %613 = vmatpush1.msra.mxu0 0.0
    %614 = vmatprep.subr.mxu0 0.0
    %615 = vmatpush1.msra.mxu0 0.0
    %616 = vmatprep.subr.mxu0 0.0
    %617 = vmatpush1.msra.mxu0 0.0
    %618 = vmatprep.subr.mxu0 0.0
    %619 = vmatpush1.msra.mxu0 0.0
    %620 = vmatprep.subr.mxu0 0.0
    %621 = vmatpush1.msra.mxu0 0.0
    %622 = vmatprep.subr.mxu0 0.0
    %623 = vmatpush1.msra.mxu0 0.0
    %624 = vmatprep.subr.mxu0 0.0
    %625 = vmatpush1.msra.mxu0 0.0
    %626 = vmatprep.subr.mxu0 0.0
    %627 = vmatpush1.msra.mxu0 %v198
    %628 = vmatprep.subr.mxu0 0.0
    %629 = vmatpush1.msra.mxu0 %v197
    %630 = vmatprep.subr.mxu0 0.0
    %631 = vmatpush1.msra.mxu0 %v196
    %632 = vmatprep.subr.mxu0 0.0
    %633 = vmatpush1.msra.mxu0 %v195
    %634 = vmatprep.subr.mxu0 0.0
    %635 = vmatpush2.msra.mxu0 0.0
    %636 = vmatprep.subr.mxu0 0.0
    %637 = vmatpush2.msra.mxu0 0.0
    %638 = vmatprep.subr.mxu0 0.0
    %639 = vmatpush2.msra.mxu0 0.0
    %640 = vmatprep.subr.mxu0 0.0
    %641 = vmatpush2.msra.mxu0 0.0
    %642 = vmatprep.subr.mxu0 0.0
    %643 = vmatpush2.msra.mxu0 0.0
    %644 = vmatprep.subr.mxu0 0.0
    %645 = vmatpush2.msra.mxu0 0.0
    %646 = vmatprep.subr.mxu0 0.0
    %647 = vmatpush2.msra.mxu0 0.0
    %648 = vmatprep.subr.mxu0 0.0
    %649 = vmatpush2.msra.mxu0 0.0
    %650 = vmatprep.subr.mxu0 0.0
    %651 = vmatpush2.msra.mxu0 0.0
    %652 = vmatprep.subr.mxu0 0.0
    %653 = vmatpush2.msra.mxu0 0.0
    %654 = vmatprep.subr.mxu0 0.0
    %655 = vmatpush2.msra.mxu0 0.0
    %656 = vmatprep.subr.mxu0 0.0
    %657 = vmatpush2.msra.mxu0 0.0
    %658 = vmatprep.subr.mxu0 0.0
    %659 = vmatpush2.msra.mxu0 0.0
    %660 = vmatprep.subr.mxu0 0.0
    %661 = vmatpush2.msra.mxu0 0.0
    %662 = vmatprep.subr.mxu0 0.0
    %663 = vmatpush2.msra.mxu0 0.0
    %664 = vmatprep.subr.mxu0 0.0
    %665 = vmatpush2.msra.mxu0 0.0
    %666 = vmatprep.mubr.f32.mxu0 0.0
    %667 = vmatmul.mubr.f32.gmra.mxu0 %v600
    %v668 = vpop.f32.mrf.mxu0
    %v669 = vadd.f32 0.0, %v668
    %v670 = vpop.f32.mrf.mxu0
    %671 = vdwg.mxu0
    %v672 = vadd.f32 %v173, %v669
    %v673 = vxor.u32 %v672, 2147483648
    %v674 = vmul.f32 %v673, 1.442695
    %v675 = vpow.pop %v674
    %v676 = vadd.f32 %v675, 1.0
    %v677 = vrcp.pop %v676
    %v678 = vmul.f32 1.0, %v677
    %v679 = vtanh.pop %v672
    %v680 = vmul.f32 %v678, %v590
    %682 = vrot.lane.b32.xlu0 %v679, 64
    %v683 = vpop.permute.xlu0 %682
    %v685 = vmul.f32 %v678, %v683
    %687 = vrot.lane.b32.xlu0 %v685, 32
    %v688 = vpop.permute.xlu0 %687
    %v690 = vadd.f32 %v680, %v688
    %v691 = vtanh.pop %v690
    %693 = vrot.lane.b32.xlu0 %v691, 64
    %v694 = vpop.permute.xlu0 %693
    %v696 = vmul.f32 %v678, %v694
    %698 = vrot.lane.b32.xlu0 %v696, 32
    %v699 = vpop.permute.xlu0 %698
    %v700 = vsel %vm105, %v699, 0
    %702 = vmatprep.subr.mxu0 0.0
    %703 = vmatpush1.msra.mxu0 0.0
    %704 = vmatprep.subr.mxu0 0.0
    %705 = vmatpush1.msra.mxu0 0.0
    %706 = vmatprep.subr.mxu0 0.0
    %707 = vmatpush1.msra.mxu0 0.0
    %708 = vmatprep.subr.mxu0 0.0
    %709 = vmatpush1.msra.mxu0 0.0
    %710 = vmatprep.subr.mxu0 0.0
    %711 = vmatpush1.msra.mxu0 0.0
    %712 = vmatprep.subr.mxu0 0.0
    %713 = vmatpush1.msra.mxu0 0.0
    %714 = vmatprep.subr.mxu0 0.0
    %715 = vmatpush1.msra.mxu0 0.0
    %716 = vmatprep.subr.mxu0 0.0
    %717 = vmatpush1.msra.mxu0 0.0
    %718 = vmatprep.subr.mxu0 0.0
    %719 = vmatpush1.msra.mxu0 0.0
    %720 = vmatprep.subr.mxu0 0.0
    %721 = vmatpush1.msra.mxu0 0.0
    %722 = vmatprep.subr.mxu0 0.0
    %723 = vmatpush1.msra.mxu0 0.0
    %724 = vmatprep.subr.mxu0 0.0
    %725 = vmatpush1.msra.mxu0 0.0
    %726 = vmatprep.subr.mxu0 0.0
    %727 = vmatpush1.msra.mxu0 %v198
    %728 = vmatprep.subr.mxu0 0.0
    %729 = vmatpush1.msra.mxu0 %v197
    %730 = vmatprep.subr.mxu0 0.0
    %731 = vmatpush1.msra.mxu0 %v196
    %732 = vmatprep.subr.mxu0 0.0
    %733 = vmatpush1.msra.mxu0 %v195
    %734 = vmatprep.subr.mxu0 0.0
    %735 = vmatpush2.msra.mxu0 0.0
    %736 = vmatprep.subr.mxu0 0.0
    %737 = vmatpush2.msra.mxu0 0.0
    %738 = vmatprep.subr.mxu0 0.0
    %739 = vmatpush2.msra.mxu0 0.0
    %740 = vmatprep.subr.mxu0 0.0
    %741 = vmatpush2.msra.mxu0 0.0
    %742 = vmatprep.subr.mxu0 0.0
    %743 = vmatpush2.msra.mxu0 0.0
    %744 = vmatprep.subr.mxu0 0.0
    %745 = vmatpush2.msra.mxu0 0.0
    %746 = vmatprep.subr.mxu0 0.0
    %747 = vmatpush2.msra.mxu0 0.0
    %748 = vmatprep.subr.mxu0 0.0
    %749 = vmatpush2.msra.mxu0 0.0
    %750 = vmatprep.subr.mxu0 0.0
    %751 = vmatpush2.msra.mxu0 0.0
    %752 = vmatprep.subr.mxu0 0.0
    %753 = vmatpush2.msra.mxu0 0.0
    %754 = vmatprep.subr.mxu0 0.0
    %755 = vmatpush2.msra.mxu0 0.0
    %756 = vmatprep.subr.mxu0 0.0
    %757 = vmatpush2.msra.mxu0 0.0
    %758 = vmatprep.subr.mxu0 0.0
    %759 = vmatpush2.msra.mxu0 0.0
    %760 = vmatprep.subr.mxu0 0.0
    %761 = vmatpush2.msra.mxu0 0.0
    %762 = vmatprep.subr.mxu0 0.0
    %763 = vmatpush2.msra.mxu0 0.0
    %764 = vmatprep.subr.mxu0 0.0
    %765 = vmatpush2.msra.mxu0 0.0
    %766 = vmatprep.mubr.f32.mxu0 0.0
    %767 = vmatmul.mubr.f32.gmra.mxu0 %v700
    %v768 = vpop.f32.mrf.mxu0
    %v769 = vadd.f32 0.0, %v768
    %v770 = vpop.f32.mrf.mxu0
    %771 = vdwg.mxu0
    %v772 = vadd.f32 %v177, %v769
    %v773 = vxor.u32 %v772, 2147483648
    %v774 = vmul.f32 %v773, 1.442695
    %v775 = vpow.pop %v774
    %v776 = vadd.f32 %v775, 1.0
    %v777 = vrcp.pop %v776
    %v778 = vmul.f32 1.0, %v777
    %v779 = vtanh.pop %v772
    %v780 = vmul.f32 %v778, %v690
    %782 = vrot.lane.b32.xlu0 %v779, 64
    %v783 = vpop.permute.xlu0 %782
    %v785 = vmul.f32 %v778, %v783
    %787 = vrot.lane.b32.xlu0 %v785, 32
    %v788 = vpop.permute.xlu0 %787
    %v790 = vadd.f32 %v780, %v788
    %v791 = vtanh.pop %v790
    %793 = vrot.lane.b32.xlu0 %v791, 64
    %v794 = vpop.permute.xlu0 %793
    %v796 = vmul.f32 %v778, %v794
    %798 = vrot.lane.b32.xlu0 %v796, 32
    %v799 = vpop.permute.xlu0 %798
    %v800 = vsel %vm105, %v799, 0
    %802 = vmatprep.subr.mxu0 0.0
    %803 = vmatpush1.msra.mxu0 0.0
    %804 = vmatprep.subr.mxu0 0.0
    %805 = vmatpush1.msra.mxu0 0.0
    %806 = vmatprep.subr.mxu0 0.0
    %807 = vmatpush1.msra.mxu0 0.0
    %808 = vmatprep.subr.mxu0 0.0
    %809 = vmatpush1.msra.mxu0 0.0
    %810 = vmatprep.subr.mxu0 0.0
    %811 = vmatpush1.msra.mxu0 0.0
    %812 = vmatprep.subr.mxu0 0.0
    %813 = vmatpush1.msra.mxu0 0.0
    %814 = vmatprep.subr.mxu0 0.0
    %815 = vmatpush1.msra.mxu0 0.0
    %816 = vmatprep.subr.mxu0 0.0
    %817 = vmatpush1.msra.mxu0 0.0
    %818 = vmatprep.subr.mxu0 0.0
    %819 = vmatpush1.msra.mxu0 0.0
    %820 = vmatprep.subr.mxu0 0.0
    %821 = vmatpush1.msra.mxu0 0.0
    %822 = vmatprep.subr.mxu0 0.0
    %823 = vmatpush1.msra.mxu0 0.0
    %824 = vmatprep.subr.mxu0 0.0
    %825 = vmatpush1.msra.mxu0 0.0
    %826 = vmatprep.subr.mxu0 0.0
    %827 = vmatpush1.msra.mxu0 %v198
    %828 = vmatprep.subr.mxu0 0.0
    %829 = vmatpush1.msra.mxu0 %v197
    %830 = vmatprep.subr.mxu0 0.0
    %831 = vmatpush1.msra.mxu0 %v196
    %832 = vmatprep.subr.mxu0 0.0
    %833 = vmatpush1.msra.mxu0 %v195
    %834 = vmatprep.subr.mxu0 0.0
    %835 = vmatpush2.msra.mxu0 0.0
    %836 = vmatprep.subr.mxu0 0.0
    %837 = vmatpush2.msra.mxu0 0.0
    %838 = vmatprep.subr.mxu0 0.0
    %839 = vmatpush2.msra.mxu0 0.0
    %840 = vmatprep.subr.mxu0 0.0
    %841 = vmatpush2.msra.mxu0 0.0
    %842 = vmatprep.subr.mxu0 0.0
    %843 = vmatpush2.msra.mxu0 0.0
    %844 = vmatprep.subr.mxu0 0.0
    %845 = vmatpush2.msra.mxu0 0.0
    %846 = vmatprep.subr.mxu0 0.0
    %847 = vmatpush2.msra.mxu0 0.0
    %848 = vmatprep.subr.mxu0 0.0
    %849 = vmatpush2.msra.mxu0 0.0
    %850 = vmatprep.subr.mxu0 0.0
    %851 = vmatpush2.msra.mxu0 0.0
    %852 = vmatprep.subr.mxu0 0.0
    %853 = vmatpush2.msra.mxu0 0.0
    %854 = vmatprep.subr.mxu0 0.0
    %855 = vmatpush2.msra.mxu0 0.0
    %856 = vmatprep.subr.mxu0 0.0
    %857 = vmatpush2.msra.mxu0 0.0
    %858 = vmatprep.subr.mxu0 0.0
    %859 = vmatpush2.msra.mxu0 0.0
    %860 = vmatprep.subr.mxu0 0.0
    %861 = vmatpush2.msra.mxu0 0.0
    %862 = vmatprep.subr.mxu0 0.0
    %863 = vmatpush2.msra.mxu0 0.0
    %864 = vmatprep.subr.mxu0 0.0
    %865 = vmatpush2.msra.mxu0 0.0
    %866 = vmatprep.mubr.f32.mxu0 0.0
    %867 = vmatmul.mubr.f32.gmra.mxu0 %v800
    %v868 = vpop.f32.mrf.mxu0
    %v869 = vadd.f32 0.0, %v868
    %v870 = vpop.f32.mrf.mxu0
    %871 = vdwg.mxu0
    %v872 = vadd.f32 %v183, %v869
    %v873 = vxor.u32 %v872, 2147483648
    %v874 = vmul.f32 %v873, 1.442695
    %v875 = vpow.pop %v874
    %v876 = vadd.f32 %v875, 1.0
    %v877 = vrcp.pop %v876
    %v878 = vmul.f32 1.0, %v877
    %v879 = vtanh.pop %v872
    %v880 = vmul.f32 %v878, %v790
    %882 = vrot.lane.b32.xlu0 %v879, 64
    %v883 = vpop.permute.xlu0 %882
    %v885 = vmul.f32 %v878, %v883
    %887 = vrot.lane.b32.xlu0 %v885, 32
    %v888 = vpop.permute.xlu0 %887
    %v890 = vadd.f32 %v880, %v888
    %v891 = vtanh.pop %v890
    %893 = vrot.lane.b32.xlu0 %v891, 64
    %v894 = vpop.permute.xlu0 %893
    %v896 = vmul.f32 %v878, %v894
    %898 = vrot.lane.b32.xlu0 %v896, 32
    %v899 = vpop.permute.xlu0 %898
    %v900 = vsel %vm105, %v899, 0
    %902 = vmatprep.subr.mxu0 0.0
    %903 = vmatpush1.msra.mxu0 0.0
    %904 = vmatprep.subr.mxu0 0.0
    %905 = vmatpush1.msra.mxu0 0.0
    %906 = vmatprep.subr.mxu0 0.0
    %907 = vmatpush1.msra.mxu0 0.0
    %908 = vmatprep.subr.mxu0 0.0
    %909 = vmatpush1.msra.mxu0 0.0
    %910 = vmatprep.subr.mxu0 0.0
    %911 = vmatpush1.msra.mxu0 0.0
    %912 = vmatprep.subr.mxu0 0.0
    %913 = vmatpush1.msra.mxu0 0.0
    %914 = vmatprep.subr.mxu0 0.0
    %915 = vmatpush1.msra.mxu0 0.0
    %916 = vmatprep.subr.mxu0 0.0
    %917 = vmatpush1.msra.mxu0 0.0
    %918 = vmatprep.subr.mxu0 0.0
    %919 = vmatpush1.msra.mxu0 0.0
    %920 = vmatprep.subr.mxu0 0.0
    %921 = vmatpush1.msra.mxu0 0.0
    %922 = vmatprep.subr.mxu0 0.0
    %923 = vmatpush1.msra.mxu0 0.0
    %924 = vmatprep.subr.mxu0 0.0
    %925 = vmatpush1.msra.mxu0 0.0
    %926 = vmatprep.subr.mxu0 0.0
    %927 = vmatpush1.msra.mxu0 %v198
    %928 = vmatprep.subr.mxu0 0.0
    %929 = vmatpush1.msra.mxu0 %v197
    %930 = vmatprep.subr.mxu0 0.0
    %931 = vmatpush1.msra.mxu0 %v196
    %932 = vmatprep.subr.mxu0 0.0
    %933 = vmatpush1.msra.mxu0 %v195
    %934 = vmatprep.subr.mxu0 0.0
    %935 = vmatpush2.msra.mxu0 0.0
    %936 = vmatprep.subr.mxu0 0.0
    %937 = vmatpush2.msra.mxu0 0.0
    %938 = vmatprep.subr.mxu0 0.0
    %939 = vmatpush2.msra.mxu0 0.0
    %940 = vmatprep.subr.mxu0 0.0
    %941 = vmatpush2.msra.mxu0 0.0
    %942 = vmatprep.subr.mxu0 0.0
    %943 = vmatpush2.msra.mxu0 0.0
    %944 = vmatprep.subr.mxu0 0.0
    %945 = vmatpush2.msra.mxu0 0.0
    %946 = vmatprep.subr.mxu0 0.0
    %947 = vmatpush2.msra.mxu0 0.0
    %948 = vmatprep.subr.mxu0 0.0
    %949 = vmatpush2.msra.mxu0 0.0
    %950 = vmatprep.subr.mxu0 0.0
    %951 = vmatpush2.msra.mxu0 0.0
    %952 = vmatprep.subr.mxu0 0.0
    %953 = vmatpush2.msra.mxu0 0.0
    %954 = vmatprep.subr.mxu0 0.0
    %955 = vmatpush2.msra.mxu0 0.0
    %956 = vmatprep.subr.mxu0 0.0
    %957 = vmatpush2.msra.mxu0 0.0
    %958 = vmatprep.subr.mxu0 0.0
    %959 = vmatpush2.msra.mxu0 0.0
    %960 = vmatprep.subr.mxu0 0.0
    %961 = vmatpush2.msra.mxu0 0.0
    %962 = vmatprep.subr.mxu0 0.0
    %963 = vmatpush2.msra.mxu0 0.0
    %964 = vmatprep.subr.mxu0 0.0
    %965 = vmatpush2.msra.mxu0 0.0
    %966 = vmatprep.mubr.f32.mxu0 0.0
    %967 = vmatmul.mubr.f32.gmra.mxu0 %v900
    %v968 = vpop.f32.mrf.mxu0
    %v969 = vadd.f32 0.0, %v968
    %v970 = vpop.f32.mrf.mxu0
    %971 = vdwg.mxu0
    %v972 = vadd.f32 %v187, %v969
    %v973 = vxor.u32 %v972, 2147483648
    %v974 = vmul.f32 %v973, 1.442695
    %v975 = vpow.pop %v974
    %v976 = vadd.f32 %v975, 1.0
    %v977 = vrcp.pop %v976
    %v978 = vmul.f32 1.0, %v977
    %v979 = vtanh.pop %v972
    %v980 = vmul.f32 %v978, %v890
    %982 = vrot.lane.b32.xlu0 %v979, 64
    %v983 = vpop.permute.xlu0 %982
    %v985 = vmul.f32 %v978, %v983
    %987 = vrot.lane.b32.xlu0 %v985, 32
    %v988 = vpop.permute.xlu0 %987
    %v990 = vadd.f32 %v980, %v988
    %v991 = vtanh.pop %v990
    %993 = vrot.lane.b32.xlu0 %v991, 64
    %v994 = vpop.permute.xlu0 %993
    %v996 = vmul.f32 %v978, %v994
    %v997 = vpack.c.bf16 %v996, %v996
    %v998 = vld [vmem:[#allocation5 + $0x40] sm:$0xff]
    %v999 = vld [vmem:[#allocation5 + $0x48] sm:$0xff]
    %v1000 = vld [vmem:[#allocation5 + $0x50] sm:$0xff]
    %v1001 = vld [vmem:[#allocation5 + $0x58] sm:$0xff]
    %s1002 = scalar_lea.vmem [#allocation7], 16
    %v1003 = vld [vmem:[%s1002] ss:$8 sm:$0x3]
    %v1005 = vlaneseq
    %v1006 = vshrl.u32 %v1005, 7
    %v1007 = vsub.s32 0, %v1006
    %v1008 = vrot.slane %v1003, %v1007
    %v1009 = vlaneseq
    %v1010 = vshrl.u32 %v1009, 7
    %v1011 = vsub.s32 1, %v1010
    %v1012 = vrot.slane %v1003, %v1011
    %1016 = vrot.lane.b32.xlu0 %v997, 32
    %v1017 = vpop.permute.xlu0 %1016
    %v1022 = vunpack.c.l.b16 %v998
    %v1023 = vunpack.c.h.b16 %v998
    %v1024 = vunpack.c.l.b16 %v999
    %v1025 = vunpack.c.h.b16 %v999
    %v1026 = vunpack.c.l.b16 %v1000
    %v1027 = vunpack.c.h.b16 %v1000
    %v1028 = vunpack.c.l.b16 %v1001
    %v1029 = vunpack.c.h.b16 %v1001
    %v1030 = vpack.c.b16 %v1024, %v1022
    %v1031 = vpack.c.b16 %v1025, %v1023
    %v1032 = vpack.c.b16 %v1028, %v1026
    %v1033 = vpack.c.b16 %v1029, %v1027
    %v1039 = vsel %vm105, %v1017, 0
    %1041 = vmatprep.subr.bf16.mxu0 0
    %1042 = vmatpush1.bf16.msra.mxu0 0
    %1043 = vmatprep.subr.bf16.mxu0 0
    %1044 = vmatpush1.bf16.msra.mxu0 0
    %1045 = vmatprep.subr.bf16.mxu0 0
    %1046 = vmatpush1.bf16.msra.mxu0 0
    %1047 = vmatprep.subr.bf16.mxu0 0
    %1048 = vmatpush1.bf16.msra.mxu0 0
    %1049 = vmatprep.subr.bf16.mxu0 0
    %1050 = vmatpush1.bf16.msra.mxu0 0
    %1051 = vmatprep.subr.bf16.mxu0 0
    %1052 = vmatpush1.bf16.msra.mxu0 0
    %1053 = vmatprep.subr.bf16.mxu0 %v1033
    %1054 = vmatpush1.bf16.msra.mxu0 %v1032
    %1055 = vmatprep.subr.bf16.mxu0 %v1031
    %1056 = vmatpush1.bf16.msra.mxu0 %v1030
    %1057 = vmatprep.subr.bf16.mxu0 0
    %1058 = vmatpush2.bf16.msra.mxu0 0
    %1059 = vmatprep.subr.bf16.mxu0 0
    %1060 = vmatpush2.bf16.msra.mxu0 0
    %1061 = vmatprep.subr.bf16.mxu0 0
    %1062 = vmatpush2.bf16.msra.mxu0 0
    %1063 = vmatprep.subr.bf16.mxu0 0
    %1064 = vmatpush2.bf16.msra.mxu0 0
    %1065 = vmatprep.subr.bf16.mxu0 0
    %1066 = vmatpush2.bf16.msra.mxu0 0
    %1067 = vmatprep.subr.bf16.mxu0 0
    %1068 = vmatpush2.bf16.msra.mxu0 0
    %1069 = vmatprep.subr.bf16.mxu0 0
    %1070 = vmatpush2.bf16.msra.mxu0 0
    %1071 = vmatprep.subr.bf16.mxu0 0
    %1072 = vmatpush2.bf16.msra.mxu0 0
    %1073 = vmatprep.mubr.bf16.mxu0 0
    %1074 = vmatmul.mubr.bf16.gmra.mxu0 %v1039
    %v1075 = vpop.f32.mrf.mxu0
    %v1076 = vadd.f32 %v1008, %v1075
    %v1077 = vpop.f32.mrf.mxu0
    %v1078 = vadd.f32 %v1012, %v1077
    %v1079 = vpop.f32.mrf.mxu0
    %v1080 = vpop.f32.mrf.mxu0
    %1081 = vdwg.mxu0
    %v1082 = vadd.f32 %v155, %v1076
    %v1083 = vadd.f32 %v159, %v1076
    %v1084 = vadd.f32 %v165, %v1076
    %v1085 = vadd.f32 %v169, %v1076
    %v1086 = vadd.f32 %v175, %v1076
    %v1087 = vadd.f32 %v179, %v1076
    %v1088 = vadd.f32 %v185, %v1076
    %v1089 = vadd.f32 %v189, %v1076
    %v1090 = vxor.u32 %v1082, 2147483648
    %v1091 = vxor.u32 %v1083, 2147483648
    %v1092 = vxor.u32 %v1084, 2147483648
    %v1093 = vxor.u32 %v1085, 2147483648
    %v1094 = vxor.u32 %v1086, 2147483648
    %v1095 = vxor.u32 %v1087, 2147483648
    %v1096 = vxor.u32 %v1088, 2147483648
    %v1097 = vxor.u32 %v1089, 2147483648
    %v1098 = vmul.f32 %v1090, 1.442695
    %v1099 = vpow.pop %v1098
    %v1100 = vmul.f32 %v1091, 1.442695
    %v1101 = vpow.pop %v1100
    %v1102 = vmul.f32 %v1092, 1.442695
    %v1103 = vpow.pop %v1102
    %v1104 = vmul.f32 %v1093, 1.442695
    %v1105 = vpow.pop %v1104
    %v1106 = vmul.f32 %v1094, 1.442695
    %v1107 = vpow.pop %v1106
    %v1108 = vmul.f32 %v1095, 1.442695
    %v1109 = vpow.pop %v1108
    %v1110 = vmul.f32 %v1096, 1.442695
    %v1111 = vpow.pop %v1110
    %v1112 = vmul.f32 %v1097, 1.442695
    %v1113 = vpow.pop %v1112
    %v1114 = vadd.f32 %v1099, 1.0
    %v1115 = vadd.f32 %v1101, 1.0
    %v1116 = vadd.f32 %v1103, 1.0
    %v1117 = vadd.f32 %v1105, 1.0
    %v1118 = vadd.f32 %v1107, 1.0
    %v1119 = vadd.f32 %v1109, 1.0
    %v1120 = vadd.f32 %v1111, 1.0
    %v1121 = vadd.f32 %v1113, 1.0
    %v1122 = vrcp.pop %v1114
    %v1123 = vmul.f32 1.0, %v1122
    %v1124 = vrcp.pop %v1115
    %v1125 = vmul.f32 1.0, %v1124
    %v1126 = vrcp.pop %v1116
    %v1127 = vmul.f32 1.0, %v1126
    %v1128 = vrcp.pop %v1117
    %v1129 = vmul.f32 1.0, %v1128
    %v1130 = vrcp.pop %v1118
    %v1131 = vmul.f32 1.0, %v1130
    %v1132 = vrcp.pop %v1119
    %v1133 = vmul.f32 1.0, %v1132
    %v1134 = vrcp.pop %v1120
    %v1135 = vmul.f32 1.0, %v1134
    %v1136 = vrcp.pop %v1121
    %v1137 = vmul.f32 1.0, %v1136
    %v1138 = vtanh.pop %v1082
    %v1139 = vtanh.pop %v1083
    %v1140 = vtanh.pop %v1084
    %v1141 = vtanh.pop %v1085
    %v1142 = vtanh.pop %v1086
    %v1143 = vtanh.pop %v1087
    %v1144 = vtanh.pop %v1088
    %v1145 = vtanh.pop %v1089
    %1154 = vrot.lane.b32.xlu0 %v1138, 64
    %v1155 = vpop.permute.xlu0 %1154
    %1156 = vrot.lane.b32.xlu0 %v1139, 64
    %v1157 = vpop.permute.xlu0 %1156
    %1158 = vrot.lane.b32.xlu0 %v1140, 64
    %v1159 = vpop.permute.xlu0 %1158
    %1160 = vrot.lane.b32.xlu0 %v1141, 64
    %v1161 = vpop.permute.xlu0 %1160
    %1162 = vrot.lane.b32.xlu0 %v1142, 64
    %v1163 = vpop.permute.xlu0 %1162
    %1164 = vrot.lane.b32.xlu0 %v1143, 64
    %v1165 = vpop.permute.xlu0 %1164
    %1166 = vrot.lane.b32.xlu0 %v1144, 64
    %v1167 = vpop.permute.xlu0 %1166
    %1168 = vrot.lane.b32.xlu0 %v1145, 64
    %v1169 = vpop.permute.xlu0 %1168
    %v1178 = vmul.f32 %v1123, %v1155
    %v1179 = vmul.f32 %v1125, %v1157
    %v1180 = vmul.f32 %v1127, %v1159
    %v1181 = vmul.f32 %v1129, %v1161
    %v1182 = vmul.f32 %v1131, %v1163
    %v1183 = vmul.f32 %v1133, %v1165
    %v1184 = vmul.f32 %v1135, %v1167
    %v1185 = vmul.f32 %v1137, %v1169
    %v1186 = vmul.f32 %v1137, 0.0
    %1188 = vrot.lane.b32.xlu0 %v1185, 32
    %v1189 = vpop.permute.xlu0 %1188
    %v1191 = vadd.f32 %v1186, %v1189
    %v1192 = vtanh.pop %v1191
    %1194 = vrot.lane.b32.xlu0 %v1192, 64
    %v1195 = vpop.permute.xlu0 %1194
    %v1197 = vmul.f32 %v1137, %v1195
    %v1198 = vmul.f32 %v1135, %v1191
    %1200 = vrot.lane.b32.xlu0 %v1184, 32
    %v1201 = vpop.permute.xlu0 %1200
    %v1203 = vadd.f32 %v1198, %v1201
    %v1204 = vtanh.pop %v1203
    %1206 = vrot.lane.b32.xlu0 %v1204, 64
    %v1207 = vpop.permute.xlu0 %1206
    %v1209 = vmul.f32 %v1135, %v1207
    %v1210 = vmul.f32 %v1133, %v1203
    %1212 = vrot.lane.b32.xlu0 %v1183, 32
    %v1213 = vpop.permute.xlu0 %1212
    %v1215 = vadd.f32 %v1210, %v1213
    %v1216 = vtanh.pop %v1215
    %1218 = vrot.lane.b32.xlu0 %v1216, 64
    %v1219 = vpop.permute.xlu0 %1218
    %v1221 = vmul.f32 %v1133, %v1219
    %v1222 = vmul.f32 %v1131, %v1215
    %1224 = vrot.lane.b32.xlu0 %v1182, 32
    %v1225 = vpop.permute.xlu0 %1224
    %v1227 = vadd.f32 %v1222, %v1225
    %v1228 = vtanh.pop %v1227
    %1230 = vrot.lane.b32.xlu0 %v1228, 64
    %v1231 = vpop.permute.xlu0 %1230
    %v1233 = vmul.f32 %v1131, %v1231
    %v1234 = vmul.f32 %v1129, %v1227
    %1236 = vrot.lane.b32.xlu0 %v1181, 32
    %v1237 = vpop.permute.xlu0 %1236
    %v1239 = vadd.f32 %v1234, %v1237
    %v1240 = vtanh.pop %v1239
    %1242 = vrot.lane.b32.xlu0 %v1240, 64
    %v1243 = vpop.permute.xlu0 %1242
    %v1245 = vmul.f32 %v1129, %v1243
    %v1246 = vmul.f32 %v1127, %v1239
    %1248 = vrot.lane.b32.xlu0 %v1180, 32
    %v1249 = vpop.permute.xlu0 %1248
    %v1251 = vadd.f32 %v1246, %v1249
    %v1252 = vtanh.pop %v1251
    %1254 = vrot.lane.b32.xlu0 %v1252, 64
    %v1255 = vpop.permute.xlu0 %1254
    %v1257 = vmul.f32 %v1127, %v1255
    %v1258 = vmul.f32 %v1125, %v1251
    %1260 = vrot.lane.b32.xlu0 %v1179, 32
    %v1261 = vpop.permute.xlu0 %1260
    %v1263 = vadd.f32 %v1258, %v1261
    %v1264 = vtanh.pop %v1263
    %1266 = vrot.lane.b32.xlu0 %v1264, 64
    %v1267 = vpop.permute.xlu0 %1266
    %v1269 = vmul.f32 %v1125, %v1267
    %v1270 = vmul.f32 %v1123, %v1263
    %1272 = vrot.lane.b32.xlu0 %v1178, 32
    %v1273 = vpop.permute.xlu0 %1272
    %v1275 = vadd.f32 %v1270, %v1273
    %v1276 = vtanh.pop %v1275
    %1278 = vrot.lane.b32.xlu0 %v1276, 64
    %v1279 = vpop.permute.xlu0 %1278
    %v1281 = vmul.f32 %v1123, %v1279
    %v1282 = vpack.c.bf16 %v396, %v296
    %v1283 = vpack.c.bf16 %v596, %v496
    %v1284 = vpack.c.bf16 %v796, %v696
    %v1285 = vpack.c.bf16 %v996, %v896
    %v1286 = vld [vmem:[#allocation5 + $0x60] sm:$0xf]
    %v1287 = vld [vmem:[#allocation5 + $0x68] sm:$0xf]
    %v1288 = vld [vmem:[#allocation5 + $0x70] sm:$0xf]
    %v1289 = vld [vmem:[#allocation5 + $0x78] sm:$0xf]
    %v1290 = vpack.c.bf16 %v1269, %v1281
    %v1291 = vpack.c.bf16 %v1245, %v1257
    %v1292 = vpack.c.bf16 %v1221, %v1233
    %v1293 = vpack.c.bf16 %v1197, %v1209
    %v1294 = vld [vmem:[#allocation5 + $0x80] sm:$0xf]
    %v1295 = vld [vmem:[#allocation5 + $0x88] sm:$0xf]
    %v1296 = vld [vmem:[#allocation5 + $0x90] sm:$0xf]
    %v1297 = vld [vmem:[#allocation5 + $0x98] sm:$0xf]
    %1302 = vrot.lane.b32.xlu0 %v1290, 32
    %v1303 = vpop.permute.xlu0 %1302
    %1304 = vrot.lane.b32.xlu0 %v1291, 32
    %v1305 = vpop.permute.xlu0 %1304
    %1306 = vrot.lane.b32.xlu0 %v1292, 32
    %v1307 = vpop.permute.xlu0 %1306
    %1308 = vrot.lane.b32.xlu0 %v1293, 32
    %v1309 = vpop.permute.xlu0 %1308
    %v1314 = vunpack.c.l.b16 %v1294
    %v1315 = vunpack.c.l.b16 %v1295
    %v1316 = vunpack.c.l.b16 %v1296
    %v1317 = vunpack.c.l.b16 %v1297
    %v1318 = vpack.c.b16 %v1315, %v1314
    %v1319 = vpack.c.b16 %v1317, %v1316
    %v1323 = vsel %vm105, %v1303, 0
    %v1326 = vsel %vm105, %v1305, 0
    %v1329 = vsel %vm105, %v1307, 0
    %v1332 = vsel %vm105, %v1309, 0
    %1334 = vmatprep.subr.bf16.mxu0 0
    %1335 = vmatpush1.bf16.msra.mxu0 0
    %1336 = vmatprep.subr.bf16.mxu0 0
    %1337 = vmatpush1.bf16.msra.mxu0 0
    %1338 = vmatprep.subr.bf16.mxu0 0
    %1339 = vmatpush1.bf16.msra.mxu0 0
    %1340 = vmatprep.subr.bf16.mxu0 0
    %1341 = vmatpush1.bf16.msra.mxu0 0
    %1342 = vmatprep.subr.bf16.mxu0 0
    %1343 = vmatpush1.bf16.msra.mxu0 0
    %1344 = vmatprep.subr.bf16.mxu0 0
    %1345 = vmatpush1.bf16.msra.mxu0 0
    %1346 = vmatprep.subr.bf16.mxu0 0
    %1347 = vmatpush1.bf16.msra.mxu0 %v1319
    %1348 = vmatprep.subr.bf16.mxu0 0
    %1349 = vmatpush1.bf16.msra.mxu0 %v1318
    %1350 = vmatprep.subr.bf16.mxu0 0
    %1351 = vmatpush2.bf16.msra.mxu0 0
    %1352 = vmatprep.subr.bf16.mxu0 0
    %1353 = vmatpush2.bf16.msra.mxu0 0
    %1354 = vmatprep.subr.bf16.mxu0 0
    %1355 = vmatpush2.bf16.msra.mxu0 0
    %1356 = vmatprep.subr.bf16.mxu0 0
    %1357 = vmatpush2.bf16.msra.mxu0 0
    %1358 = vmatprep.subr.bf16.mxu0 0
    %1359 = vmatpush2.bf16.msra.mxu0 0
    %1360 = vmatprep.subr.bf16.mxu0 0
    %1361 = vmatpush2.bf16.msra.mxu0 0
    %1362 = vmatprep.subr.bf16.mxu0 0
    %1363 = vmatpush2.bf16.msra.mxu0 0
    %1364 = vmatprep.subr.bf16.mxu0 0
    %1365 = vmatpush2.bf16.msra.mxu0 0
    %1366 = vmatprep.mubr.bf16.mxu0 0
    %1367 = vmatmul.mubr.bf16.gmra.mxu0 %v1323
    %v1368 = vpop.f32.mrf.mxu0
    %v1369 = vadd.f32 0.0, %v1368
    %v1370 = vpop.f32.mrf.mxu0
    %v1371 = vpop.f32.mrf.mxu0
    %v1372 = vadd.f32 0.0, %v1371
    %v1373 = vpop.f32.mrf.mxu0
    %1374 = vmatprep.mubr.bf16.mxu0 0
    %1375 = vmatmul.mubr.bf16.gmra.mxu0 %v1326
    %v1376 = vpop.f32.mrf.mxu0
    %v1377 = vadd.f32 0.0, %v1376
    %v1378 = vpop.f32.mrf.mxu0
    %v1379 = vpop.f32.mrf.mxu0
    %v1380 = vadd.f32 0.0, %v1379
    %v1381 = vpop.f32.mrf.mxu0
    %1382 = vmatprep.mubr.bf16.mxu0 0
    %1383 = vmatmul.mubr.bf16.gmra.mxu0 %v1329
    %v1384 = vpop.f32.mrf.mxu0
    %v1385 = vadd.f32 0.0, %v1384
    %v1386 = vpop.f32.mrf.mxu0
    %v1387 = vpop.f32.mrf.mxu0
    %v1388 = vadd.f32 0.0, %v1387
    %v1389 = vpop.f32.mrf.mxu0
    %1390 = vmatprep.mubr.bf16.mxu0 0
    %1391 = vmatmul.mubr.bf16.gmra.mxu0 %v1332
    %v1392 = vpop.f32.mrf.mxu0
    %v1393 = vadd.f32 0.0, %v1392
    %v1394 = vpop.f32.mrf.mxu0
    %v1395 = vpop.f32.mrf.mxu0
    %v1396 = vadd.f32 0.0, %v1395
    %v1397 = vpop.f32.mrf.mxu0
    %1398 = vdwg.mxu0
    %1403 = vrot.lane.b32.xlu0 %v1282, 32
    %v1404 = vpop.permute.xlu0 %1403
    %1405 = vrot.lane.b32.xlu0 %v1283, 32
    %v1406 = vpop.permute.xlu0 %1405
    %1407 = vrot.lane.b32.xlu0 %v1284, 32
    %v1408 = vpop.permute.xlu0 %1407
    %1409 = vrot.lane.b32.xlu0 %v1285, 32
    %v1410 = vpop.permute.xlu0 %1409
    %v1415 = vunpack.c.l.b16 %v1286
    %v1416 = vunpack.c.l.b16 %v1287
    %v1417 = vunpack.c.l.b16 %v1288
    %v1418 = vunpack.c.l.b16 %v1289
    %v1419 = vpack.c.b16 %v1416, %v1415
    %v1420 = vpack.c.b16 %v1418, %v1417
    %v1424 = vsel %vm105, %v1404, 0
    %v1427 = vsel %vm105, %v1406, 0
    %v1430 = vsel %vm105, %v1408, 0
    %v1433 = vsel %vm105, %v1410, 0
    %1435 = vmatprep.subr.bf16.mxu0 0
    %1436 = vmatpush1.bf16.msra.mxu0 0
    %1437 = vmatprep.subr.bf16.mxu0 0
    %1438 = vmatpush1.bf16.msra.mxu0 0
    %1439 = vmatprep.subr.bf16.mxu0 0
    %1440 = vmatpush1.bf16.msra.mxu0 0
    %1441 = vmatprep.subr.bf16.mxu0 0
    %1442 = vmatpush1.bf16.msra.mxu0 0
    %1443 = vmatprep.subr.bf16.mxu0 0
    %1444 = vmatpush1.bf16.msra.mxu0 0
    %1445 = vmatprep.subr.bf16.mxu0 0
    %1446 = vmatpush1.bf16.msra.mxu0 0
    %1447 = vmatprep.subr.bf16.mxu0 0
    %1448 = vmatpush1.bf16.msra.mxu0 %v1420
    %1449 = vmatprep.subr.bf16.mxu0 0
    %1450 = vmatpush1.bf16.msra.mxu0 %v1419
    %1451 = vmatprep.subr.bf16.mxu0 0
    %1452 = vmatpush2.bf16.msra.mxu0 0
    %1453 = vmatprep.subr.bf16.mxu0 0
    %1454 = vmatpush2.bf16.msra.mxu0 0
    %1455 = vmatprep.subr.bf16.mxu0 0
    %1456 = vmatpush2.bf16.msra.mxu0 0
    %1457 = vmatprep.subr.bf16.mxu0 0
    %1458 = vmatpush2.bf16.msra.mxu0 0
    %1459 = vmatprep.subr.bf16.mxu0 0
    %1460 = vmatpush2.bf16.msra.mxu0 0
    %1461 = vmatprep.subr.bf16.mxu0 0
    %1462 = vmatpush2.bf16.msra.mxu0 0
    %1463 = vmatprep.subr.bf16.mxu0 0
    %1464 = vmatpush2.bf16.msra.mxu0 0
    %1465 = vmatprep.subr.bf16.mxu0 0
    %1466 = vmatpush2.bf16.msra.mxu0 0
    %1467 = vmatprep.mubr.bf16.mxu0 0
    %1468 = vmatmul.mubr.bf16.gmra.mxu0 %v1424
    %v1469 = vpop.f32.mrf.mxu0
    %v1470 = vadd.f32 %v1369, %v1469
    %v1471 = vpop.f32.mrf.mxu0
    %v1472 = vpop.f32.mrf.mxu0
    %v1473 = vadd.f32 %v1372, %v1472
    %v1474 = vpop.f32.mrf.mxu0
    %1475 = vmatprep.mubr.bf16.mxu0 0
    %1476 = vmatmul.mubr.bf16.gmra.mxu0 %v1427
    %v1477 = vpop.f32.mrf.mxu0
    %v1478 = vadd.f32 %v1377, %v1477
    %v1479 = vpop.f32.mrf.mxu0
    %v1480 = vpop.f32.mrf.mxu0
    %v1481 = vadd.f32 %v1380, %v1480
    %v1482 = vpop.f32.mrf.mxu0
    %1483 = vmatprep.mubr.bf16.mxu0 0
    %1484 = vmatmul.mubr.bf16.gmra.mxu0 %v1430
    %v1485 = vpop.f32.mrf.mxu0
    %v1486 = vadd.f32 %v1385, %v1485
    %v1487 = vpop.f32.mrf.mxu0
    %v1488 = vpop.f32.mrf.mxu0
    %v1489 = vadd.f32 %v1388, %v1488
    %v1490 = vpop.f32.mrf.mxu0
    %1491 = vmatprep.mubr.bf16.mxu0 0
    %1492 = vmatmul.mubr.bf16.gmra.mxu0 %v1433
    %v1493 = vpop.f32.mrf.mxu0
    %v1494 = vadd.f32 %v1393, %v1493
    %v1495 = vpop.f32.mrf.mxu0
    %v1496 = vpop.f32.mrf.mxu0
    %v1497 = vadd.f32 %v1396, %v1496
    %v1498 = vpop.f32.mrf.mxu0
    %1499 = vdwg.mxu0
    %v1500 = vld [vmem:[#allocation7 + $0x20] ss:$0 sm:$0xff]
    %v1501 = vadd.f32 %v1470, %v1500
    %v1502 = vadd.f32 %v1473, %v1500
    %v1503 = vadd.f32 %v1478, %v1500
    %v1504 = vadd.f32 %v1481, %v1500
    %v1505 = vadd.f32 %v1486, %v1500
    %v1506 = vadd.f32 %v1489, %v1500
    %v1507 = vadd.f32 %v1494, %v1500
    %v1508 = vadd.f32 %v1497, %v1500
    %v1509 = vpack.c.bf16 %v1078, %v1078
    %v1510 = vld [vmem:[#allocation5 + $0xa0] sm:$0xf]
    %v1511 = vld [vmem:[#allocation5 + $0xa8] sm:$0xf]
    %v1512 = vld [vmem:[#allocation5 + $0xb0] sm:$0xf]
    %v1513 = vld [vmem:[#allocation5 + $0xb8] sm:$0xf]
    %v1514 = vld [vmem:[#allocation7 + $0x30] ss:$0 sm:$0xff]
    %v1519 = vunpack.c.l.b16 %v1510
    %v1520 = vunpack.c.l.b16 %v1511
    %v1521 = vunpack.c.l.b16 %v1512
    %v1522 = vunpack.c.l.b16 %v1513
    %v1523 = vpack.c.b16 %v1520, %v1519
    %v1524 = vpack.c.b16 %v1522, %v1521
    %v1528 = vsel %vm105, %v1509, 0
    %1530 = vmatprep.subr.bf16.mxu0 0
    %1531 = vmatpush1.bf16.msra.mxu0 0
    %1532 = vmatprep.subr.bf16.mxu0 0
    %1533 = vmatpush1.bf16.msra.mxu0 0
    %1534 = vmatprep.subr.bf16.mxu0 0
    %1535 = vmatpush1.bf16.msra.mxu0 0
    %1536 = vmatprep.subr.bf16.mxu0 0
    %1537 = vmatpush1.bf16.msra.mxu0 0
    %1538 = vmatprep.subr.bf16.mxu0 0
    %1539 = vmatpush1.bf16.msra.mxu0 0
    %1540 = vmatprep.subr.bf16.mxu0 0
    %1541 = vmatpush1.bf16.msra.mxu0 0
    %1542 = vmatprep.subr.bf16.mxu0 0
    %1543 = vmatpush1.bf16.msra.mxu0 %v1524
    %1544 = vmatprep.subr.bf16.mxu0 0
    %1545 = vmatpush1.bf16.msra.mxu0 %v1523
    %1546 = vmatprep.subr.bf16.mxu0 0
    %1547 = vmatpush2.bf16.msra.mxu0 0
    %1548 = vmatprep.subr.bf16.mxu0 0
    %1549 = vmatpush2.bf16.msra.mxu0 0
    %1550 = vmatprep.subr.bf16.mxu0 0
    %1551 = vmatpush2.bf16.msra.mxu0 0
    %1552 = vmatprep.subr.bf16.mxu0 0
    %1553 = vmatpush2.bf16.msra.mxu0 0
    %1554 = vmatprep.subr.bf16.mxu0 0
    %1555 = vmatpush2.bf16.msra.mxu0 0
    %1556 = vmatprep.subr.bf16.mxu0 0
    %1557 = vmatpush2.bf16.msra.mxu0 0
    %1558 = vmatprep.subr.bf16.mxu0 0
    %1559 = vmatpush2.bf16.msra.mxu0 0
    %1560 = vmatprep.subr.bf16.mxu0 0
    %1561 = vmatpush2.bf16.msra.mxu0 0
    %1562 = vmatprep.mubr.bf16.mxu0 0
    %1563 = vmatmul.mubr.bf16.gmra.mxu0 %v1528
    %v1564 = vpop.f32.mrf.mxu0
    %v1565 = vadd.f32 %v1514, %v1564
    %v1566 = vpop.f32.mrf.mxu0
    %v1567 = vpop.f32.mrf.mxu0
    %v1568 = vpop.f32.mrf.mxu0
    %1569 = vdwg.mxu0
    %v1570 = vadd.f32 %v1501, %v1565
    %v1571 = vadd.f32 %v1502, %v1565
    %v1572 = vadd.f32 %v1503, %v1565
    %v1573 = vadd.f32 %v1504, %v1565
    %v1574 = vadd.f32 %v1505, %v1565
    %v1575 = vadd.f32 %v1506, %v1565
    %v1576 = vadd.f32 %v1507, %v1565
    %v1577 = vadd.f32 %v1508, %v1565
    %v1578 = vtanh.pop %v1570
    %v1579 = vtanh.pop %v1571
    %v1580 = vtanh.pop %v1572
    %v1581 = vtanh.pop %v1573
    %v1582 = vtanh.pop %v1574
    %v1583 = vtanh.pop %v1575
    %v1584 = vtanh.pop %v1576
    %v1585 = vtanh.pop %v1577
    %v1586 = vld [vmem:[#allocation7 + $0x40] ss:$0 sm:$0xff]
    %v1587 = vmul.f32 %v1578, %v1586
    %v1588 = vmul.f32 %v1579, %v1586
    %v1589 = vmul.f32 %v1580, %v1586
    %v1590 = vmul.f32 %v1581, %v1586
    %v1591 = vmul.f32 %v1582, %v1586
    %v1592 = vmul.f32 %v1583, %v1586
    %v1593 = vmul.f32 %v1584, %v1586
    %v1594 = vmul.f32 %v1585, %v1586
    %v1595 = vsel %vm105, %v1587, 0.0
    %1596 = vadd.xlane.f32.xlu0 %v1595
    %v1597 = vpop.xlane.xlu0 %1596
    %v1598 = vsel %vm105, %v1588, 0.0
    %1599 = vadd.xlane.f32.xlu0 %v1598
    %v1600 = vpop.xlane.xlu0 %1599
    %v1601 = vsel %vm105, %v1589, 0.0
    %1602 = vadd.xlane.f32.xlu0 %v1601
    %v1603 = vpop.xlane.xlu0 %1602
    %v1604 = vsel %vm105, %v1590, 0.0
    %1605 = vadd.xlane.f32.xlu0 %v1604
    %v1606 = vpop.xlane.xlu0 %1605
    %v1607 = vsel %vm105, %v1591, 0.0
    %1608 = vadd.xlane.f32.xlu0 %v1607
    %v1609 = vpop.xlane.xlu0 %1608
    %v1610 = vsel %vm105, %v1592, 0.0
    %1611 = vadd.xlane.f32.xlu0 %v1610
    %v1612 = vpop.xlane.xlu0 %1611
    %v1613 = vsel %vm105, %v1593, 0.0
    %1614 = vadd.xlane.f32.xlu0 %v1613
    %v1615 = vpop.xlane.xlu0 %1614
    %v1616 = vsel %vm105, %v1594, 0.0
    %1617 = vadd.xlane.f32.xlu0 %v1616
    %v1618 = vpop.xlane.xlu0 %1617
    %v1619 = vld [vmem:[#allocation7 + $0x50] ss:$0 sm:$0xff]
    %v1620 = vadd.f32 %v1597, %v1619
    %v1621 = vadd.f32 %v1600, %v1619
    %v1622 = vadd.f32 %v1603, %v1619
    %v1623 = vadd.f32 %v1606, %v1619
    %v1624 = vadd.f32 %v1609, %v1619
    %v1625 = vadd.f32 %v1612, %v1619
    %v1626 = vadd.f32 %v1615, %v1619
    %v1627 = vadd.f32 %v1618, %v1619
    %vm1628 = vcmask 7168
    %v1629 = vsel %vm1628, %v1620, -inf
    %v1630 = vsel %vm1628, %v1621, -inf
    %v1631 = vsel %vm1628, %v1622, -inf
    %v1632 = vsel %vm1628, %v1623, -inf
    %v1633 = vsel %vm1628, %v1624, -inf
    %v1634 = vmax.f32 %v1629, %v1633
    %v1635 = vsel %vm1628, %v1625, -inf
    %v1636 = vmax.f32 %v1630, %v1635
    %v1637 = vsel %vm1628, %v1626, -inf
    %v1638 = vmax.f32 %v1631, %v1637
    %v1639 = vsel %vm1628, %v1627, -inf
    %v1640 = vmax.f32 %v1632, %v1639
    %v1641 = vmax.f32 %v1634, %v1636
    %v1642 = vmax.f32 %v1638, %v1640
    %v1643 = vmax.f32 %v1641, %v1642
    %v1644 = vsub.f32 %v1620, %v1643
    %v1645 = vsub.f32 %v1621, %v1643
    %v1646 = vsub.f32 %v1622, %v1643
    %v1647 = vsub.f32 %v1623, %v1643
    %v1648 = vsub.f32 %v1624, %v1643
    %v1649 = vsub.f32 %v1625, %v1643
    %v1650 = vsub.f32 %v1626, %v1643
    %v1651 = vsub.f32 %v1627, %v1643
    %v1652 = vmul.f32 %v1644, 1.442695
    %v1653 = vpow.pop %v1652
    %v1654 = vmul.f32 %v1645, 1.442695
    %v1655 = vpow.pop %v1654
    %v1656 = vmul.f32 %v1646, 1.442695
    %v1657 = vpow.pop %v1656
    %v1658 = vmul.f32 %v1647, 1.442695
    %v1659 = vpow.pop %v1658
    %v1660 = vmul.f32 %v1648, 1.442695
    %v1661 = vpow.pop %v1660
    %v1662 = vmul.f32 %v1649, 1.442695
    %v1663 = vpow.pop %v1662
    %v1664 = vmul.f32 %v1650, 1.442695
    %v1665 = vpow.pop %v1664
    %v1666 = vmul.f32 %v1651, 1.442695
    %v1667 = vpow.pop %v1666
    %v1668 = vsel %vm1628, %v1653, 0.0
    %v1669 = vsel %vm1628, %v1655, 0.0
    %v1670 = vadd.f32 %v1668, %v1669
    %v1671 = vsel %vm1628, %v1657, 0.0
    %v1672 = vadd.f32 %v1670, %v1671
    %v1673 = vsel %vm1628, %v1659, 0.0
    %v1674 = vadd.f32 %v1672, %v1673
    %v1675 = vsel %vm1628, %v1661, 0.0
    %v1676 = vadd.f32 %v1674, %v1675
    %v1677 = vsel %vm1628, %v1663, 0.0
    %v1678 = vadd.f32 %v1676, %v1677
    %v1679 = vsel %vm1628, %v1665, 0.0
    %v1680 = vadd.f32 %v1678, %v1679
    %v1681 = vsel %vm1628, %v1667, 0.0
    %v1682 = vadd.f32 %v1680, %v1681
    %v1683 = vrcp.pop %v1682
    %v1684 = vmul.f32 %v1653, %v1683
    %v1685 = vmul.f32 %v1655, %v1683
    %v1686 = vmul.f32 %v1657, %v1683
    %v1687 = vmul.f32 %v1659, %v1683
    %v1688 = vmul.f32 %v1661, %v1683
    %v1689 = vmul.f32 %v1663, %v1683
    %v1690 = vmul.f32 %v1665, %v1683
    %v1691 = vmul.f32 %v1667, %v1683
    %1693 = vset.pattern.permute.xlu0 0
    %1694 = vperm.xlu0 %1693, %v1684
    %v1695 = vpop.permute.xlu0 %1694
    %1698 = vset.pattern.permute.xlu0 0
    %1699 = vperm.xlu0 %1698, %v1685
    %v1700 = vpop.permute.xlu0 %1699
    %1703 = vset.pattern.permute.xlu0 0
    %1704 = vperm.xlu0 %1703, %v1686
    %v1705 = vpop.permute.xlu0 %1704
    %1708 = vset.pattern.permute.xlu0 0
    %1709 = vperm.xlu0 %1708, %v1687
    %v1710 = vpop.permute.xlu0 %1709
    %1713 = vset.pattern.permute.xlu0 0
    %1714 = vperm.xlu0 %1713, %v1688
    %v1715 = vpop.permute.xlu0 %1714
    %1718 = vset.pattern.permute.xlu0 0
    %1719 = vperm.xlu0 %1718, %v1689
    %v1720 = vpop.permute.xlu0 %1719
    %1723 = vset.pattern.permute.xlu0 0
    %1724 = vperm.xlu0 %1723, %v1690
    %v1725 = vpop.permute.xlu0 %1724
    %1728 = vset.pattern.permute.xlu0 0
    %1729 = vperm.xlu0 %1728, %v1691
    %v1730 = vpop.permute.xlu0 %1729
    %v1732 = vmul.f32 %v1695, %v296
    %v1733 = vmul.f32 %v1700, %v396
    %v1734 = vmul.f32 %v1705, %v496
    %v1735 = vmul.f32 %v1710, %v596
    %v1736 = vmul.f32 %v1715, %v696
    %v1737 = vmul.f32 %v1720, %v796
    %v1738 = vmul.f32 %v1725, %v896
    %v1739 = vmul.f32 %v1730, %v996
    %vm1740 = vcmask 1048320
    %v1741 = vsel %vm1740, %v1732, 0.0
    %v1742 = vsel %vm1740, %v1733, 0.0
    %v1743 = vadd.f32 %v1741, %v1742
    %v1744 = vsel %vm1740, %v1734, 0.0
    %v1745 = vadd.f32 %v1743, %v1744
    %v1746 = vsel %vm1740, %v1735, 0.0
    %v1747 = vadd.f32 %v1745, %v1746
    %v1748 = vsel %vm1740, %v1736, 0.0
    %v1749 = vadd.f32 %v1747, %v1748
    %v1750 = vsel %vm1740, %v1737, 0.0
    %v1751 = vadd.f32 %v1749, %v1750
    %v1752 = vsel %vm1740, %v1738, 0.0
    %v1753 = vadd.f32 %v1751, %v1752
    %v1754 = vsel %vm1740, %v1739, 0.0
    %v1755 = vadd.f32 %v1753, %v1754
    %v1756 = vmul.f32 %v1695, %v1281
    %v1757 = vmul.f32 %v1700, %v1269
    %v1758 = vmul.f32 %v1705, %v1257
    %v1759 = vmul.f32 %v1710, %v1245
    %v1760 = vmul.f32 %v1715, %v1233
    %v1761 = vmul.f32 %v1720, %v1221
    %v1762 = vmul.f32 %v1725, %v1209
    %v1763 = vmul.f32 %v1730, %v1197
    %v1764 = vsel %vm1740, %v1756, 0.0
    %v1765 = vsel %vm1740, %v1757, 0.0
    %v1766 = vadd.f32 %v1764, %v1765
    %v1767 = vsel %vm1740, %v1758, 0.0
    %v1768 = vadd.f32 %v1766, %v1767
    %v1769 = vsel %vm1740, %v1759, 0.0
    %v1770 = vadd.f32 %v1768, %v1769
    %v1771 = vsel %vm1740, %v1760, 0.0
    %v1772 = vadd.f32 %v1770, %v1771
    %v1773 = vsel %vm1740, %v1761, 0.0
    %v1774 = vadd.f32 %v1772, %v1773
    %v1775 = vsel %vm1740, %v1762, 0.0
    %v1776 = vadd.f32 %v1774, %v1775
    %v1777 = vsel %vm1740, %v1763, 0.0
    %v1778 = vadd.f32 %v1776, %v1777
    %v1779 = vld [vmem:[#allocation5 + $0xc0] sm:$0xf]
    %v1780 = vld [vmem:[#allocation5 + $0xc8] sm:$0xf]
    %v1781 = vld [vmem:[#allocation5 + $0xd0] sm:$0xf]
    %v1782 = vld [vmem:[#allocation5 + $0xd8] sm:$0xf]
    %v1783 = vpack.c.bf16 %v1755, %v1755
    %v1784 = vld [vmem:[#allocation5 + $0xe0] sm:$0xf]
    %v1785 = vld [vmem:[#allocation5 + $0xe8] sm:$0xf]
    %v1786 = vld [vmem:[#allocation5 + $0xf0] sm:$0xf]
    %v1787 = vld [vmem:[#allocation5 + $0xf8] sm:$0xf]
    %1789 = vrot.lane.b32.xlu0 %v1783, 32
    %v1790 = vpop.permute.xlu0 %1789
    %v1795 = vunpack.c.l.b16 %v1784
    %v1796 = vunpack.c.l.b16 %v1785
    %v1797 = vunpack.c.l.b16 %v1786
    %v1798 = vunpack.c.l.b16 %v1787
    %v1799 = vpack.c.b16 %v1796, %v1795
    %v1800 = vpack.c.b16 %v1798, %v1797
    %v1804 = vsel %vm105, %v1790, 0
    %1806 = vmatprep.subr.bf16.mxu0 0
    %1807 = vmatpush1.bf16.msra.mxu0 0
    %1808 = vmatprep.subr.bf16.mxu0 0
    %1809 = vmatpush1.bf16.msra.mxu0 0
    %1810 = vmatprep.subr.bf16.mxu0 0
    %1811 = vmatpush1.bf16.msra.mxu0 0
    %1812 = vmatprep.subr.bf16.mxu0 0
    %1813 = vmatpush1.bf16.msra.mxu0 0
    %1814 = vmatprep.subr.bf16.mxu0 0
    %1815 = vmatpush1.bf16.msra.mxu0 0
    %1816 = vmatprep.subr.bf16.mxu0 0
    %1817 = vmatpush1.bf16.msra.mxu0 0
    %1818 = vmatprep.subr.bf16.mxu0 0
    %1819 = vmatpush1.bf16.msra.mxu0 %v1800
    %1820 = vmatprep.subr.bf16.mxu0 0
    %1821 = vmatpush1.bf16.msra.mxu0 %v1799
    %1822 = vmatprep.subr.bf16.mxu0 0
    %1823 = vmatpush2.bf16.msra.mxu0 0
    %1824 = vmatprep.subr.bf16.mxu0 0
    %1825 = vmatpush2.bf16.msra.mxu0 0
    %1826 = vmatprep.subr.bf16.mxu0 0
    %1827 = vmatpush2.bf16.msra.mxu0 0
    %1828 = vmatprep.subr.bf16.mxu0 0
    %1829 = vmatpush2.bf16.msra.mxu0 0
    %1830 = vmatprep.subr.bf16.mxu0 0
    %1831 = vmatpush2.bf16.msra.mxu0 0
    %1832 = vmatprep.subr.bf16.mxu0 0
    %1833 = vmatpush2.bf16.msra.mxu0 0
    %1834 = vmatprep.subr.bf16.mxu0 0
    %1835 = vmatpush2.bf16.msra.mxu0 0
    %1836 = vmatprep.subr.bf16.mxu0 0
    %1837 = vmatpush2.bf16.msra.mxu0 0
    %1838 = vmatprep.mubr.bf16.mxu0 0
    %1839 = vmatmul.mubr.bf16.gmra.mxu0 %v1804
    %v1840 = vpop.f32.mrf.mxu0
    %v1841 = vadd.f32 0.0, %v1840
    %v1842 = vpop.f32.mrf.mxu0
    %v1843 = vpop.f32.mrf.mxu0
    %v1844 = vpop.f32.mrf.mxu0
    %1845 = vdwg.mxu0
    %v1850 = vunpack.c.l.b16 %v1779
    %v1851 = vunpack.c.l.b16 %v1780
    %v1852 = vunpack.c.l.b16 %v1781
    %v1853 = vunpack.c.l.b16 %v1782
    %v1854 = vpack.c.b16 %v1851, %v1850
    %v1855 = vpack.c.b16 %v1853, %v1852
    %1858 = vmatprep.subr.bf16.mxu0 0
    %1859 = vmatpush1.bf16.msra.mxu0 0
    %1860 = vmatprep.subr.bf16.mxu0 0
    %1861 = vmatpush1.bf16.msra.mxu0 0
    %1862 = vmatprep.subr.bf16.mxu0 0
    %1863 = vmatpush1.bf16.msra.mxu0 0
    %1864 = vmatprep.subr.bf16.mxu0 0
    %1865 = vmatpush1.bf16.msra.mxu0 0
    %1866 = vmatprep.subr.bf16.mxu0 0
    %1867 = vmatpush1.bf16.msra.mxu0 0
    %1868 = vmatprep.subr.bf16.mxu0 0
    %1869 = vmatpush1.bf16.msra.mxu0 0
    %1870 = vmatprep.subr.bf16.mxu0 0
    %1871 = vmatpush1.bf16.msra.mxu0 %v1855
    %1872 = vmatprep.subr.bf16.mxu0 0
    %1873 = vmatpush1.bf16.msra.mxu0 %v1854
    %1874 = vmatprep.subr.bf16.mxu0 0
    %1875 = vmatpush2.bf16.msra.mxu0 0
    %1876 = vmatprep.subr.bf16.mxu0 0
    %1877 = vmatpush2.bf16.msra.mxu0 0
    %1878 = vmatprep.subr.bf16.mxu0 0
    %1879 = vmatpush2.bf16.msra.mxu0 0
    %1880 = vmatprep.subr.bf16.mxu0 0
    %1881 = vmatpush2.bf16.msra.mxu0 0
    %1882 = vmatprep.subr.bf16.mxu0 0
    %1883 = vmatpush2.bf16.msra.mxu0 0
    %1884 = vmatprep.subr.bf16.mxu0 0
    %1885 = vmatpush2.bf16.msra.mxu0 0
    %1886 = vmatprep.subr.bf16.mxu0 0
    %1887 = vmatpush2.bf16.msra.mxu0 0
    %1888 = vmatprep.subr.bf16.mxu0 0
    %1889 = vmatpush2.bf16.msra.mxu0 0
    %1890 = vmatprep.mubr.bf16.mxu0 0
    %1891 = vmatmul.mubr.bf16.gmra.mxu0 %v1528
    %v1892 = vpop.f32.mrf.mxu0
    %v1893 = vadd.f32 %v1841, %v1892
    %v1894 = vpop.f32.mrf.mxu0
    %v1895 = vpop.f32.mrf.mxu0
    %v1896 = vpop.f32.mrf.mxu0
    %1897 = vdwg.mxu0
    %v1898 = vpack.c.bf16 %v1778, %v1778
    %v1899 = vld [vmem:[#allocation5 + $0x100] sm:$0xf]
    %v1900 = vld [vmem:[#allocation5 + $0x108] sm:$0xf]
    %v1901 = vld [vmem:[#allocation5 + $0x110] sm:$0xf]
    %v1902 = vld [vmem:[#allocation5 + $0x118] sm:$0xf]
    %1904 = vrot.lane.b32.xlu0 %v1898, 32
    %v1905 = vpop.permute.xlu0 %1904
    %v1910 = vunpack.c.l.b16 %v1899
    %v1911 = vunpack.c.l.b16 %v1900
    %v1912 = vunpack.c.l.b16 %v1901
    %v1913 = vunpack.c.l.b16 %v1902
    %v1914 = vpack.c.b16 %v1911, %v1910
    %v1915 = vpack.c.b16 %v1913, %v1912
    %v1919 = vsel %vm105, %v1905, 0
    %1921 = vmatprep.subr.bf16.mxu0 0
    %1922 = vmatpush1.bf16.msra.mxu0 0
    %1923 = vmatprep.subr.bf16.mxu0 0
    %1924 = vmatpush1.bf16.msra.mxu0 0
    %1925 = vmatprep.subr.bf16.mxu0 0
    %1926 = vmatpush1.bf16.msra.mxu0 0
    %1927 = vmatprep.subr.bf16.mxu0 0
    %1928 = vmatpush1.bf16.msra.mxu0 0
    %1929 = vmatprep.subr.bf16.mxu0 0
    %1930 = vmatpush1.bf16.msra.mxu0 0
    %1931 = vmatprep.subr.bf16.mxu0 0
    %1932 = vmatpush1.bf16.msra.mxu0 0
    %1933 = vmatprep.subr.bf16.mxu0 0
    %1934 = vmatpush1.bf16.msra.mxu0 %v1915
    %1935 = vmatprep.subr.bf16.mxu0 0
    %1936 = vmatpush1.bf16.msra.mxu0 %v1914
    %1937 = vmatprep.subr.bf16.mxu0 0
    %1938 = vmatpush2.bf16.msra.mxu0 0
    %1939 = vmatprep.subr.bf16.mxu0 0
    %1940 = vmatpush2.bf16.msra.mxu0 0
    %1941 = vmatprep.subr.bf16.mxu0 0
    %1942 = vmatpush2.bf16.msra.mxu0 0
    %1943 = vmatprep.subr.bf16.mxu0 0
    %1944 = vmatpush2.bf16.msra.mxu0 0
    %1945 = vmatprep.subr.bf16.mxu0 0
    %1946 = vmatpush2.bf16.msra.mxu0 0
    %1947 = vmatprep.subr.bf16.mxu0 0
    %1948 = vmatpush2.bf16.msra.mxu0 0
    %1949 = vmatprep.subr.bf16.mxu0 0
    %1950 = vmatpush2.bf16.msra.mxu0 0
    %1951 = vmatprep.subr.bf16.mxu0 0
    %1952 = vmatpush2.bf16.msra.mxu0 0
    %1953 = vmatprep.mubr.bf16.mxu0 0
    %1954 = vmatmul.mubr.bf16.gmra.mxu0 %v1919
    %v1955 = vpop.f32.mrf.mxu0
    %v1956 = vadd.f32 0.0, %v1955
    %v1957 = vpop.f32.mrf.mxu0
    %v1958 = vpop.f32.mrf.mxu0
    %v1959 = vpop.f32.mrf.mxu0
    %1960 = vdwg.mxu0
    %v1961 = vadd.f32 %v1893, %v1956
    %v1962 = vld [vmem:[#allocation7 + $0x60] ss:$0 sm:$0xff]
    %v1963 = vadd.f32 %v1961, %v1962
    %v1964 = vpack.c.bf16 %v1963, %v1963
    %v1965 = vld [vmem:[#allocation5 + $0x120] sm:$0xf]
    %v1966 = vld [vmem:[#allocation5 + $0x128] sm:$0xf]
    %v1967 = vld [vmem:[#allocation5 + $0x130] sm:$0xf]
    %v1968 = vld [vmem:[#allocation5 + $0x138] sm:$0xf]
    %v1969 = vld [vmem:[#allocation5 + $0x140] sm:$0xf]
    %v1970 = vld [vmem:[#allocation5 + $0x148] sm:$0xf]
    %v1971 = vld [vmem:[#allocation7 + $0x70] ss:$0 sm:$0xff]
    %v1978 = vunpack.c.l.b16 %v1965
    %v1979 = vunpack.c.l.b16 %v1966
    %v1980 = vunpack.c.l.b16 %v1967
    %v1981 = vunpack.c.l.b16 %v1968
    %v1982 = vunpack.c.l.b16 %v1969
    %v1983 = vunpack.c.l.b16 %v1970
    %v1984 = vpack.c.b16 %v1979, %v1978
    %v1985 = vpack.c.b16 %v1981, %v1980
    %v1986 = vpack.c.b16 %v1983, %v1982
    %vm1990 = vcmask 392192
    %v1992 = vsel %vm1990, %v1964, 0
    %1994 = vmatprep.subr.bf16.mxu0 0
    %1995 = vmatpush1.bf16.msra.mxu0 0
    %1996 = vmatprep.subr.bf16.mxu0 0
    %1997 = vmatpush1.bf16.msra.mxu0 0
    %1998 = vmatprep.subr.bf16.mxu0 0
    %1999 = vmatpush1.bf16.msra.mxu0 0
    %2000 = vmatprep.subr.bf16.mxu0 0
    %2001 = vmatpush1.bf16.msra.mxu0 0
    %2002 = vmatprep.subr.bf16.mxu0 0
    %2003 = vmatpush1.bf16.msra.mxu0 0
    %2004 = vmatprep.subr.bf16.mxu0 0
    %2005 = vmatpush1.bf16.msra.mxu0 %v1986
    %2006 = vmatprep.subr.bf16.mxu0 0
    %2007 = vmatpush1.bf16.msra.mxu0 %v1985
    %2008 = vmatprep.subr.bf16.mxu0 0
    %2009 = vmatpush1.bf16.msra.mxu0 %v1984
    %2010 = vmatprep.subr.bf16.mxu0 0
    %2011 = vmatpush2.bf16.msra.mxu0 0
    %2012 = vmatprep.subr.bf16.mxu0 0
    %2013 = vmatpush2.bf16.msra.mxu0 0
    %2014 = vmatprep.subr.bf16.mxu0 0
    %2015 = vmatpush2.bf16.msra.mxu0 0
    %2016 = vmatprep.subr.bf16.mxu0 0
    %2017 = vmatpush2.bf16.msra.mxu0 0
    %2018 = vmatprep.subr.bf16.mxu0 0
    %2019 = vmatpush2.bf16.msra.mxu0 0
    %2020 = vmatprep.subr.bf16.mxu0 0
    %2021 = vmatpush2.bf16.msra.mxu0 0
    %2022 = vmatprep.subr.bf16.mxu0 0
    %2023 = vmatpush2.bf16.msra.mxu0 0
    %2024 = vmatprep.subr.bf16.mxu0 0
    %2025 = vmatpush2.bf16.msra.mxu0 0
    %2026 = vmatprep.mubr.bf16.mxu0 0
    %2027 = vmatmul.mubr.bf16.gmra.mxu0 %v1992
    %v2028 = vpop.f32.mrf.mxu0
    %v2029 = vadd.f32 %v1971, %v2028
    %v2030 = vpop.f32.mrf.mxu0
    %v2031 = vpop.f32.mrf.mxu0
    %v2032 = vpop.f32.mrf.mxu0
    %2033 = vdwg.mxu0
    %v2034 = vxor.u32 %v2029, 2147483648
    %v2035 = vmul.f32 %v2034, 1.442695
    %v2036 = vpow.pop %v2035
    %v2037 = vadd.f32 %v2036, 1.0
    %v2038 = vrcp.pop %v2037
    %v2039 = vmul.f32 1.0, %v2038
    %2041 = vrot.lane.b32.xlu0 %v996, 34
    %v2042 = vpop.permute.xlu0 %2041
    %vm2044 = vcmask 15360
    %v2045 = vsel %vm2044, %v2039, %v2042
    %vm2046 = vcmask 277504
    %v2047 = vsel %vm2046, %v2045, 0.0
    %2048 = vst [vmem:[#allocation8] sm:$0xff] %v2047
    // Predicated region
    $region26: #{tpu_custom_call.1} parent=1 // pred_check
      _
    $region27: #{tpu_custom_call.1} parent=1 // pred_check_branch
      %2050 = sbr.rel (0) target = $region29
    $region28: #{tpu_custom_call.1} parent=1 // pred_region
      %s2052 = ssub.s32 128, 128
      %2053 = vsyncadd [#allocation4], %s2052
      %s2055 = sshll.u32 [#allocation8], 4
      %s2056 = int_to_ptr.vmem [resolvable:$true] %s2055
      %2058 = dma.vmem_to_hbm [thread:$0]  %s2056, 128, %s3, [#allocation4]
    $region29: #{tpu_custom_call.1} parent=1 // pred_fallthru
      _
    // Predicated region
    $region30: #{tpu_custom_call.1} parent=1 // pred_check
      _
    $region31: #{tpu_custom_call.1} parent=1 // pred_check_branch
      %2060 = sbr.rel (0) target = $region33
    $region32: #{tpu_custom_call.1} parent=1 // pred_region
      %2061 = dma.done [#allocation4], 128
    $region33: #{tpu_custom_call.1} parent=1 // pred_fallthru
      _
    %2062 = vsyncpa [#allocation3], 1
    %2063 = vsyncpa [#allocation6], 1
    %2064 = vsyncpa [#allocation4], 1

</llo_original>
